<compile_context>
chip_gen: v5e
topology: v5e:2x2
jax: 0.10.0
libtpu: 0.0.40
codegen_flags: <defaults>
</compile_context>

<pallas_src>
import functools

import jax
import jax.numpy as jnp
from jax import lax
from jax.experimental import pallas as pl
from jax.experimental.pallas import tpu as pltpu

LN_EPS = 1e-12
_INV_SQRT2 = 0.7071067811865476
_DN_T = (((1,), (1,)), ((), ()))          # contract last dims: a @ b.T


def _round_up(x, m):
    return ((x + m - 1) // m) * m


def _erf_f32(x):
    # Abramowitz & Stegun 7.1.26, max abs err ~1.5e-7. Uses only mul/add/exp/
    # select so it lowers on the VPU/EUP without relying on a lax.erf rule.
    a1, a2, a3, a4, a5 = (0.254829592, -0.284496736, 1.421413741,
                          -1.453152027, 1.061405429)
    p = 0.3275911
    ax = jnp.abs(x)
    t = 1.0 / (1.0 + p * ax)
    poly = ((((a5 * t + a4) * t + a3) * t + a2) * t + a1) * t
    y = 1.0 - poly * jnp.exp(-ax * ax)
    return jnp.where(x >= 0, y, -y)


def _gelu_exact(x):
    return 0.5 * x * (1.0 + _erf_f32(x * _INV_SQRT2))


def _lm_head_kernel(x_ref, w1_ref, b1_ref, gamma_ref, beta_ref,
                    wd_ref, bv_ref, o_ref, t_ref):
    # x_ref   : (tm, H)   hidden-state row tile
    # w1_ref  : (H, H)    transform.dense.weight (out, in) — resident
    # b1_ref  : (1, H)    transform.dense.bias
    # gamma/beta_ref : (1, H) LayerNorm weight / bias
    # wd_ref  : (tv, H)   decoder.weight vocab tile (rows of embedding table)
    # bv_ref  : (1, tv)   decoder bias vocab tile
    # o_ref   : (tm, tv)  logits tile
    # t_ref   : (tm, H)   f32 scratch: LayerNorm(gelu(dense(x))), reused over j
    j = pl.program_id(1)

    @pl.when(j == 0)
    def _():
        x = x_ref[...]
        w1 = w1_ref[...]
        if x.dtype != w1.dtype:
            # Mixed dtypes: promote both (small H x H matmul, negligible cost).
            x = x.astype(jnp.float32)
            w1 = w1.astype(jnp.float32)
        h = lax.dot_general(x, w1, _DN_T, preferred_element_type=jnp.float32)
        h = h + b1_ref[...].astype(jnp.float32)
        h = _gelu_exact(h)
        mean = jnp.mean(h, axis=-1, keepdims=True)
        c = h - mean
        var = jnp.mean(c * c, axis=-1, keepdims=True)
        normed = c * lax.rsqrt(var + LN_EPS)
        t_ref[...] = (normed * gamma_ref[...].astype(jnp.float32)
                      + beta_ref[...].astype(jnp.float32))

    wd = wd_ref[...]
    t = t_ref[...]
    if wd.dtype != jnp.float32:
        # Keep the MXU in the weights' native (e.g. bf16) precision instead of
        # up-casting the big weight tile on the VPU; accumulate in f32.
        t = t.astype(wd.dtype)
    logits = lax.dot_general(t, wd, _DN_T, preferred_element_type=jnp.float32)
    o_ref[...] = (logits + bv_ref[...].astype(jnp.float32)).astype(o_ref.dtype)


@functools.partial(jax.jit, static_argnames=("tm", "tv", "out_dtype"))
def cross_lm_prediction_head(hidden_states, dense_w, dense_b, ln_gamma, ln_beta,
                             decoder_w, decoder_b, *, tm=None, tv=None,
                             out_dtype=None):
    """Forward pass of CrossLMPredictionHead (eval mode).

    hidden_states : (B, S, H) float32/bf16
    dense_w       : (H, H)  transform.dense.weight (PyTorch (out, in))
    dense_b       : (H,)    transform.dense.bias
    ln_gamma/beta : (H,)    transform.LayerNorm weight / bias
    decoder_w     : (V, H)  tied embedding weights
    decoder_b     : (V,)    vocab bias
    returns       : (B, S, V)
    """
    B, S, H = hidden_states.shape
    V, H2 = decoder_w.shape
    assert H2 == H
    M = B * S
    out_dtype = out_dtype or hidden_states.dtype

    # Tile selection: big-ish tiles (decoder matmul dominates), conservative
    # enough for v7x's 64 MiB VMEM.  Pad M / V up to the tile so non-divisible
    # shapes still run; padded rows/cols are sliced off afterwards.
    if tm is None:
        tm = min(256, _round_up(M, 8))
    if tv is None:
        tv = min(1024, _round_up(V, 128))
    assert tm % 8 == 0 and tv % 128 == 0
    Mp = _round_up(M, tm)
    Vp = _round_up(V, tv)

    x2d = hidden_states.reshape(M, H)
    if Mp != M:
        x2d = jnp.pad(x2d, ((0, Mp - M), (0, 0)))
    dw = decoder_w
    db = decoder_b
    if Vp != V:
        dw = jnp.pad(dw, ((0, Vp - V), (0, 0)))
        db = jnp.pad(db, (0, Vp - V))

    b1 = dense_b.reshape(1, H)
    gamma = ln_gamma.reshape(1, H)
    beta = ln_beta.reshape(1, H)
    bv = db.reshape(1, Vp)

    # Rough VMEM budget (double-buffered blocks + f32 scratch); explicit limit
    # so the same tiling stays within v7x's smaller scoped VMEM.
    def _b(dt):
        return jnp.dtype(dt).itemsize

    vmem_est = (2 * (tm * H * _b(x2d.dtype)
                     + H * H * _b(dense_w.dtype)
                     + 3 * H * _b(dense_b.dtype)
                     + tv * H * _b(dw.dtype)
                     + tv * _b(db.dtype)
                     + tm * tv * _b(out_dtype))
                + 4 * tm * H)
    vmem_limit = min(max(int(1.25 * vmem_est) + (2 << 20), 16 << 20), 64 << 20)

    grid_spec = pltpu.PrefetchScalarGridSpec(
        num_scalar_prefetch=0,
        grid=(Mp // tm, Vp // tv),
        in_specs=[
            pl.BlockSpec((tm, H), lambda i, j: (i, 0)),    # hidden states
            pl.BlockSpec((H, H), lambda i, j: (0, 0)),     # dense weight (resident)
            pl.BlockSpec((1, H), lambda i, j: (0, 0)),     # dense bias
            pl.BlockSpec((1, H), lambda i, j: (0, 0)),     # LN gamma
            pl.BlockSpec((1, H), lambda i, j: (0, 0)),     # LN beta
            pl.BlockSpec((tv, H), lambda i, j: (j, 0)),    # decoder weight tile
            pl.BlockSpec((1, tv), lambda i, j: (0, j)),    # decoder bias tile
        ],
        out_specs=pl.BlockSpec((tm, tv), lambda i, j: (i, j)),
        scratch_shapes=[pltpu.VMEM((tm, H), jnp.float32)],
    )

    out2d = pl.pallas_call(
        _lm_head_kernel,
        out_shape=jax.ShapeDtypeStruct((Mp, Vp), out_dtype),
        grid_spec=grid_spec,
        compiler_params=pltpu.CompilerParams(
            dimension_semantics=("parallel", "arbitrary"),
            vmem_limit_bytes=vmem_limit),
    )(x2d, dense_w, b1, gamma, beta, dw, bv)
    if Mp != M or Vp != V:
        out2d = out2d[:M, :V]
    return out2d.reshape(B, S, V)


def cross_lm_prediction_head_ref(hidden_states, dense_w, dense_b, ln_gamma,
                                 ln_beta, decoder_w, decoder_b):
    """Pure-JAX reference matching the PyTorch forward (exact erf GELU)."""
    hp = lax.Precision.HIGHEST
    h = jnp.einsum("bsh,oh->bso", hidden_states, dense_w, precision=hp) + dense_b
    h = 0.5 * h * (1.0 + lax.erf(h * _INV_SQRT2))
    mean = jnp.mean(h, axis=-1, keepdims=True)
    var = jnp.mean((h - mean) ** 2, axis=-1, keepdims=True)
    h = (h - mean) / jnp.sqrt(var + LN_EPS)
    h = h * ln_gamma + ln_beta
    return jnp.einsum("bsh,vh->bsv", h, decoder_w, precision=hp) + decoder_b


if __name__ == "__main__":
    key = jax.random.PRNGKey(0)
    k1, k2, k3, k4, k5, k6, k7 = jax.random.split(key, 7)

    # Small config consistent with the module: hidden_size=H, vocab=V
    B, S, H, V = 2, 8, 256, 1024

    hidden_states = jax.random.normal(k1, (B, S, H), jnp.float32)
    dense_w = 0.02 * jax.random.normal(k2, (H, H), jnp.float32)
    dense_b = 0.02 * jax.random.normal(k3, (H,), jnp.float32)
    ln_gamma = 1.0 + 0.01 * jax.random.normal(k4, (H,), jnp.float32)
    ln_beta = 0.01 * jax.random.normal(k5, (H,), jnp.float32)
    decoder_w = 0.02 * jax.random.normal(k6, (V, H), jnp.float32)  # tied embeddings
    # Module initializes the vocab bias to zeros; use a small random one here
    # so the bias-add path is actually exercised.
    decoder_b = 0.01 * jax.random.normal(k7, (V,), jnp.float32)

    out = cross_lm_prediction_head(hidden_states, dense_w, dense_b,
                                   ln_gamma, ln_beta, decoder_w, decoder_b)
    out = jax.block_until_ready(out)

    ref = cross_lm_prediction_head_ref(hidden_states, dense_w, dense_b,
                                       ln_gamma, ln_beta, decoder_w, decoder_b)
    assert out.shape == (B, S, V)
    max_err = float(jnp.max(jnp.abs(out - ref)))
    assert jnp.allclose(out, ref, atol=2e-3, rtol=2e-3), f"mismatch: {max_err}"

    print("KERNEL_OK")
</pallas_src>

<mosaic_0001>
module attributes {stable_mosaic.version = 11 : i64} {
  func.func @_lm_head_kernel(%arg0: i32, %arg1: i32, %arg2: memref<16x256xf32, #tpu.memory_space<vmem>>, %arg3: memref<256x256xf32, #tpu.memory_space<vmem>>, %arg4: memref<1x256xf32, #tpu.memory_space<vmem>>, %arg5: memref<1x256xf32, #tpu.memory_space<vmem>>, %arg6: memref<1x256xf32, #tpu.memory_space<vmem>>, %arg7: memref<1024x256xf32, #tpu.memory_space<vmem>>, %arg8: memref<1x1024xf32, #tpu.memory_space<vmem>>, %arg9: memref<16x1024xf32, #tpu.memory_space<vmem>>, %arg10: memref<16x256xf32, #tpu.memory_space<vmem>>) attributes {dimension_semantics = [#tpu.dimension_semantics<parallel>, #tpu.dimension_semantics<arbitrary>], iteration_bounds = array<i64: 1, 1>, scalar_prefetch = 0 : i64, scratch_operands = 1 : i64, tpu.core_type = #tpu.core_type<tc>, window_params = [{transform_indices = @transform_0, window_bounds = array<i64: 16, 256>}, {pipeline_mode = #tpu.pipeline_mode<synchronous>, transform_indices = @transform_1, window_bounds = array<i64: 256, 256>}, {pipeline_mode = #tpu.pipeline_mode<synchronous>, transform_indices = @transform_2, window_bounds = array<i64: 1, 256>}, {pipeline_mode = #tpu.pipeline_mode<synchronous>, transform_indices = @transform_3, window_bounds = array<i64: 1, 256>}, {pipeline_mode = #tpu.pipeline_mode<synchronous>, transform_indices = @transform_4, window_bounds = array<i64: 1, 256>}, {transform_indices = @transform_5, window_bounds = array<i64: 1024, 256>}, {transform_indices = @transform_6, window_bounds = array<i64: 1, 1024>}, {transform_indices = @transform_7, window_bounds = array<i64: 16, 1024>}]} {
    %c0_i32 = arith.constant 0 : i32
    %0 = arith.cmpi eq, %arg1, %c0_i32 : i32
    %1 = arith.extui %0 : i1 to i32
    %c0_i32_0 = arith.constant 0 : i32
    %2 = arith.cmpi ne, %1, %c0_i32_0 : i32
    scf.if %2 {
      %c0_8 = arith.constant 0 : index
      %c0_9 = arith.constant 0 : index
      %10 = vector.load %arg2[%c0_8, %c0_9] : memref<16x256xf32, #tpu.memory_space<vmem>>, vector<16x256xf32>
      %c0_10 = arith.constant 0 : index
      %c0_11 = arith.constant 0 : index
      %11 = vector.load %arg3[%c0_10, %c0_11] : memref<256x256xf32, #tpu.memory_space<vmem>>, vector<256x256xf32>
      %cst_12 = arith.constant dense<0.000000e+00> : vector<16x256xf32>
      %12 = tpu.matmul %10, %11, %cst_12 {dimension_numbers = #tpu.dot_dimension_numbers<[1], [1], [0], [0], [0, 0, 1, 0], [], []>} : vector<16x256xf32>, vector<256x256xf32>, vector<16x256xf32> -> vector<16x256xf32>
      %c0_13 = arith.constant 0 : index
      %c0_14 = arith.constant 0 : index
      %13 = vector.load %arg4[%c0_13, %c0_14] : memref<1x256xf32, #tpu.memory_space<vmem>>, vector<1x256xf32>
      %14 = vector.broadcast %13 : vector<1x256xf32> to vector<16x256xf32>
      %15 = arith.addf %12, %14 : vector<16x256xf32>
      %cst_15 = arith.constant 5.000000e-01 : f32
      %16 = vector.broadcast %cst_15 : f32 to vector<16x256xf32>
      %17 = arith.mulf %16, %15 : vector<16x256xf32>
      %cst_16 = arith.constant 0.707106769 : f32
      %18 = vector.broadcast %cst_16 : f32 to vector<16x256xf32>
      %19 = arith.mulf %15, %18 : vector<16x256xf32>
      %20 = math.absf %19 : vector<16x256xf32>
      %cst_17 = arith.constant 0.327591091 : f32
      %21 = vector.broadcast %cst_17 : f32 to vector<16x256xf32>
      %22 = arith.mulf %21, %20 : vector<16x256xf32>
      %cst_18 = arith.constant 1.000000e+00 : f32
      %23 = vector.broadcast %cst_18 : f32 to vector<16x256xf32>
      %24 = arith.addf %23, %22 : vector<16x256xf32>
      %cst_19 = arith.constant 1.000000e+00 : f32
      %25 = vector.broadcast %cst_19 : f32 to vector<16x256xf32>
      %26 = arith.divf %25, %24 : vector<16x256xf32>
      %cst_20 = arith.constant 1.06140542 : f32
      %27 = vector.broadcast %cst_20 : f32 to vector<16x256xf32>
      %28 = arith.mulf %27, %26 : vector<16x256xf32>
      %cst_21 = arith.constant -1.45315206 : f32
      %29 = vector.broadcast %cst_21 : f32 to vector<16x256xf32>
      %30 = arith.addf %28, %29 : vector<16x256xf32>
      %31 = arith.mulf %30, %26 : vector<16x256xf32>
      %cst_22 = arith.constant 1.42141378 : f32
      %32 = vector.broadcast %cst_22 : f32 to vector<16x256xf32>
      %33 = arith.addf %31, %32 : vector<16x256xf32>
      %34 = arith.mulf %33, %26 : vector<16x256xf32>
      %cst_23 = arith.constant -0.284496725 : f32
      %35 = vector.broadcast %cst_23 : f32 to vector<16x256xf32>
      %36 = arith.addf %34, %35 : vector<16x256xf32>
      %37 = arith.mulf %36, %26 : vector<16x256xf32>
      %cst_24 = arith.constant 0.254829586 : f32
      %38 = vector.broadcast %cst_24 : f32 to vector<16x256xf32>
      %39 = arith.addf %37, %38 : vector<16x256xf32>
      %40 = arith.mulf %39, %26 : vector<16x256xf32>
      %cst_25 = arith.constant 0.000000e+00 : f32
      %41 = vector.broadcast %cst_25 : f32 to vector<16x256xf32>
      %42 = arith.subf %41, %20 : vector<16x256xf32>
      %43 = arith.mulf %42, %20 : vector<16x256xf32>
      %44 = math.exp %43 : vector<16x256xf32>
      %45 = arith.mulf %40, %44 : vector<16x256xf32>
      %cst_26 = arith.constant 1.000000e+00 : f32
      %46 = vector.broadcast %cst_26 : f32 to vector<16x256xf32>
      %47 = arith.subf %46, %45 : vector<16x256xf32>
      %cst_27 = arith.constant 0.000000e+00 : f32
      %48 = vector.broadcast %cst_27 : f32 to vector<16x256xf32>
      %49 = arith.cmpf oge, %19, %48 : vector<16x256xf32>
      %cst_28 = arith.constant 0.000000e+00 : f32
      %50 = vector.broadcast %cst_28 : f32 to vector<16x256xf32>
      %51 = arith.subf %50, %47 : vector<16x256xf32>
      %52 = arith.select %49, %47, %51 : vector<16x256xi1>, vector<16x256xf32>
      %cst_29 = arith.constant 1.000000e+00 : f32
      %53 = vector.broadcast %cst_29 : f32 to vector<16x256xf32>
      %54 = arith.addf %53, %52 : vector<16x256xf32>
      %55 = arith.mulf %17, %54 : vector<16x256xf32>
      %cst_30 = arith.constant dense<0.000000e+00> : vector<16xf32>
      %56 = vector.multi_reduction <add>, %55, %cst_30 [1] : vector<16x256xf32> to vector<16xf32>
      %57 = vector.shape_cast %56 : vector<16xf32> to vector<16x1xf32>
      %cst_31 = arith.constant 2.560000e+02 : f32
      %58 = vector.broadcast %cst_31 : f32 to vector<16x1xf32>
      %59 = arith.divf %57, %58 : vector<16x1xf32>
      %60 = vector.broadcast %59 : vector<16x1xf32> to vector<16x256xf32>
      %61 = arith.subf %55, %60 : vector<16x256xf32>
      %62 = arith.mulf %61, %61 : vector<16x256xf32>
      %cst_32 = arith.constant dense<0.000000e+00> : vector<16xf32>
      %63 = vector.multi_reduction <add>, %62, %cst_32 [1] : vector<16x256xf32> to vector<16xf32>
      %64 = vector.shape_cast %63 : vector<16xf32> to vector<16x1xf32>
      %cst_33 = arith.constant 2.560000e+02 : f32
      %65 = vector.broadcast %cst_33 : f32 to vector<16x1xf32>
      %66 = arith.divf %64, %65 : vector<16x1xf32>
      %cst_34 = arith.constant 9.99999996E-13 : f32
      %67 = vector.broadcast %cst_34 : f32 to vector<16x1xf32>
      %68 = arith.addf %66, %67 : vector<16x1xf32>
      %69 = math.rsqrt %68 : vector<16x1xf32>
      %70 = vector.broadcast %69 : vector<16x1xf32> to vector<16x256xf32>
      %71 = arith.mulf %61, %70 : vector<16x256xf32>
      %c0_35 = arith.constant 0 : index
      %c0_36 = arith.constant 0 : index
      %72 = vector.load %arg5[%c0_35, %c0_36] : memref<1x256xf32, #tpu.memory_space<vmem>>, vector<1x256xf32>
      %73 = vector.broadcast %72 : vector<1x256xf32> to vector<16x256xf32>
      %74 = arith.mulf %71, %73 : vector<16x256xf32>
      %c0_37 = arith.constant 0 : index
      %c0_38 = arith.constant 0 : index
      %75 = vector.load %arg6[%c0_37, %c0_38] : memref<1x256xf32, #tpu.memory_space<vmem>>, vector<1x256xf32>
      %76 = vector.broadcast %75 : vector<1x256xf32> to vector<16x256xf32>
      %77 = arith.addf %74, %76 : vector<16x256xf32>
      %c0_39 = arith.constant 0 : index
      %c0_40 = arith.constant 0 : index
      %78 = vector.load %arg10[%c0_39, %c0_40] : memref<16x256xf32, #tpu.memory_space<vmem>>, vector<16x256xf32>
      tpu.vector_store %arg10[%c0_39, %c0_40], %77 {strides = array<i32>} : memref<16x256xf32, #tpu.memory_space<vmem>>, vector<16x256xf32>,
    } else {
    }
    %c0 = arith.constant 0 : index
    %c0_1 = arith.constant 0 : index
    %3 = vector.load %arg7[%c0, %c0_1] : memref<1024x256xf32, #tpu.memory_space<vmem>>, vector<1024x256xf32>
    %c0_2 = arith.constant 0 : index
    %c0_3 = arith.constant 0 : index
    %4 = vector.load %arg10[%c0_2, %c0_3] : memref<16x256xf32, #tpu.memory_space<vmem>>, vector<16x256xf32>
    %cst = arith.constant dense<0.000000e+00> : vector<16x1024xf32>
    %5 = tpu.matmul %4, %3, %cst {dimension_numbers = #tpu.dot_dimension_numbers<[1], [1], [0], [0], [0, 0, 1, 0], [], []>} : vector<16x256xf32>, vector<1024x256xf32>, vector<16x1024xf32> -> vector<16x1024xf32>
    %c0_4 = arith.constant 0 : index
    %c0_5 = arith.constant 0 : index
    %6 = vector.load %arg8[%c0_4, %c0_5] : memref<1x1024xf32, #tpu.memory_space<vmem>>, vector<1x1024xf32>
    %7 = vector.broadcast %6 : vector<1x1024xf32> to vector<16x1024xf32>
    %8 = arith.addf %5, %7 : vector<16x1024xf32>
    %c0_6 = arith.constant 0 : index
    %c0_7 = arith.constant 0 : index
    %9 = vector.load %arg9[%c0_6, %c0_7] : memref<16x1024xf32, #tpu.memory_space<vmem>>, vector<16x1024xf32>
    tpu.vector_store %arg9[%c0_6, %c0_7], %8 {strides = array<i32>} : memref<16x1024xf32, #tpu.memory_space<vmem>>, vector<16x1024xf32>,
    return
  }
  func.func @transform_0(%arg0: i32, %arg1: i32) -> (i32, i32) {
    %c0_i32 = arith.constant 0 : i32
    %c0_i32_0 = arith.constant 0 : i32
    return %arg0, %c0_i32 : i32, i32
  }
  func.func @transform_1(%arg0: i32, %arg1: i32) -> (i32, i32) {
    %c0_i32 = arith.constant 0 : i32
    %c0_i32_0 = arith.constant 0 : i32
    %c0_i32_1 = arith.constant 0 : i32
    return %c0_i32, %c0_i32_0 : i32, i32
  }
  func.func @transform_2(%arg0: i32, %arg1: i32) -> (i32, i32) {
    %c0_i32 = arith.constant 0 : i32
    %c0_i32_0 = arith.constant 0 : i32
    %c0_i32_1 = arith.constant 0 : i32
    return %c0_i32, %c0_i32_0 : i32, i32
  }
  func.func @transform_3(%arg0: i32, %arg1: i32) -> (i32, i32) {
    %c0_i32 = arith.constant 0 : i32
    %c0_i32_0 = arith.constant 0 : i32
    %c0_i32_1 = arith.constant 0 : i32
    return %c0_i32, %c0_i32_0 : i32, i32
  }
  func.func @transform_4(%arg0: i32, %arg1: i32) -> (i32, i32) {
    %c0_i32 = arith.constant 0 : i32
    %c0_i32_0 = arith.constant 0 : i32
    %c0_i32_1 = arith.constant 0 : i32
    return %c0_i32, %c0_i32_0 : i32, i32
  }
  func.func @transform_5(%arg0: i32, %arg1: i32) -> (i32, i32) {
    %c0_i32 = arith.constant 0 : i32
    %c0_i32_0 = arith.constant 0 : i32
    return %arg1, %c0_i32 : i32, i32
  }
  func.func @transform_6(%arg0: i32, %arg1: i32) -> (i32, i32) {
    %c0_i32 = arith.constant 0 : i32
    %c0_i32_0 = arith.constant 0 : i32
    return %c0_i32, %arg1 : i32, i32
  }
  func.func @transform_7(%arg0: i32, %arg1: i32) -> (i32, i32) {
    %c0_i32 = arith.constant 0 : i32
    return %arg0, %arg1 : i32, i32
  }
}

</mosaic_0001>

<llo_original>
// kernel: cross_lm_prediction_head.1
$region0: #{cross_lm_prediction_head.1}
  #allocation0 [shape = 'u32[]', space=smem, size = 0x4, offset = 0x4, fixed_abs, tag = 'smem constant byte address 0x4 - core index']
  #allocation1 [shape = 'u32[72,128]{1,0:T(1,128)}', space=vmem, size = 0x9000, scoped, tag = 'internal scratch']
  #allocation2 [shape = 'f32[16,256]{1,0:T(8,128)}', space=vmem, size = 0x4000, scoped, tag = 'scratch operand']
  %s0 = inlined_call_operand.hbm [shape: f32[16,256], index: 0, kind: input, shape index: {}]
  %s1 = inlined_call_operand.hbm [shape: f32[256,256], index: 1, kind: input, shape index: {}]
  %s2 = inlined_call_operand.vmem [shape: f32[1,256], index: 2, kind: input, shape index: {}]
  %s3 = inlined_call_operand.hbm [shape: f32[1,256], index: 3, kind: input, shape index: {}]
  %s4 = inlined_call_operand.hbm [shape: f32[1,256], index: 4, kind: input, shape index: {}]
  %s5 = inlined_call_operand.hbm [shape: f32[1024,256], index: 5, kind: input, shape index: {}]
  %s6 = inlined_call_operand.vmem [shape: f32[1,1024], index: 6, kind: input, shape index: {}]
  %s7 = inlined_call_operand.hbm [shape: f32[16,1024], index: 7, kind: output, shape index: {}]
  %s8 = sld [smem:[#allocation0]]
  $region62: #{cross_lm_prediction_head.1} parent=0
    _
  %s10 = ssub.s32 1, %s8
  %s11 = scalar_select 0, %s10, %s8
  $region1: #{cross_lm_prediction_head.1} parent=0
    #allocation3 [shape = 'u8[16384]{0}', space=vmem, size = 0x4000, scoped, tag = 'input window, operand 0, single buffered']
    #allocation4 [shape = 's32[1]{0}', space=sflag, size = 0x4, scoped, tag = 'scoped memory for cross_lm_prediction_head.1']
    #allocation5 [shape = 's32[1]{0}', space=sflag, size = 0x4, scoped, tag = 'scoped memory for cross_lm_prediction_head.1']
    #allocation6 [shape = 'u8[262144]{0}', space=vmem, size = 0x40000, scoped, tag = 'input window, operand 1, single buffered']
    #allocation7 [shape = 's32[1]{0}', space=sflag, size = 0x4, scoped, tag = 'scoped memory for cross_lm_prediction_head.1']
    #allocation8 [shape = 'u8[1024]{0}', space=vmem, size = 0x400, scoped, tag = 'input window, operand 3, single buffered']
    #allocation9 [shape = 'u8[1024]{0}', space=vmem, size = 0x400, scoped, tag = 'input window, operand 4, single buffered']
    #allocation10 [shape = 's32[1]{0}', space=sflag, size = 0x4, scoped, tag = 'scoped memory for cross_lm_prediction_head.1']
    #allocation11 [shape = 'u8[1048576]{0}', space=vmem, size = 0x100000, scoped, tag = 'input window, operand 5, single buffered']
    #allocation12 [shape = 'u8[65536]{0}', space=vmem, size = 0x10000, scoped, tag = 'output window, operand 0, single buffered']
    %12 = vsyncpa [#allocation4], 0
    %13 = vsyncpa [#allocation7], 0
    %14 = vsyncpa [#allocation10], 0
    %15 = vsyncpa [#allocation5], 0
    // Predicated region
    $region2: #{cross_lm_prediction_head.1} parent=1 // pred_check
      _
    $region3: #{cross_lm_prediction_head.1} parent=1 // pred_check_branch
      %17 = sbr.rel (0) target = $region5
    $region4: #{cross_lm_prediction_head.1} parent=1 // pred_region
      %19 = vsyncadd [#allocation4], 0
      %s20 = sshll.u32 %s0, 4
      %s21 = int_to_ptr.hbm [resolvable:$true] %s20
      %s22 = sshll.u32 [#allocation3], 4
      %s23 = int_to_ptr.vmem [resolvable:$true] %s22
      %28 = dma.hbm_to_vmem [thread:$0]  %s21, 512, %s23, [#allocation4], 256, 256, 16
    $region5: #{cross_lm_prediction_head.1} parent=1 // pred_fallthru
      _
    // Predicated region
    $region6: #{cross_lm_prediction_head.1} parent=1 // pred_check
      _
    $region7: #{cross_lm_prediction_head.1} parent=1 // pred_check_branch
      %30 = sbr.rel (0) target = $region9
    $region8: #{cross_lm_prediction_head.1} parent=1 // pred_region
      %32 = vsyncadd [#allocation7], 0
      %s33 = sshll.u32 %s1, 4
      %s34 = int_to_ptr.hbm [resolvable:$true] %s33
      %s35 = sshll.u32 [#allocation6], 4
      %s36 = int_to_ptr.vmem [resolvable:$true] %s35
      %41 = dma.hbm_to_vmem [thread:$0]  %s34, 8192, %s36, [#allocation7], 256, 256, 16
    $region9: #{cross_lm_prediction_head.1} parent=1 // pred_fallthru
      _
    // Predicated region
    $region10: #{cross_lm_prediction_head.1} parent=1 // pred_check
      _
    $region11: #{cross_lm_prediction_head.1} parent=1 // pred_check_branch
      %43 = sbr.rel (0) target = $region13
    $region12: #{cross_lm_prediction_head.1} parent=1 // pred_region
      _
    $region13: #{cross_lm_prediction_head.1} parent=1 // pred_fallthru
      _
    // Predicated region
    $region14: #{cross_lm_prediction_head.1} parent=1 // pred_check
      _
    $region15: #{cross_lm_prediction_head.1} parent=1 // pred_check_branch
      %45 = sbr.rel (0) target = $region17
    $region16: #{cross_lm_prediction_head.1} parent=1 // pred_region
      %47 = vsyncadd [#allocation7], 0
      %s49 = sshll.u32 %s3, 4
      %s50 = int_to_ptr.hbm [resolvable:$true] %s49
      %s51 = sshll.u32 [#allocation8], 4
      %s52 = int_to_ptr.vmem [resolvable:$true] %s51
      %54 = dma.hbm_to_vmem [thread:$0]  %s50, 32, %s52, [#allocation7]
    $region17: #{cross_lm_prediction_head.1} parent=1 // pred_fallthru
      _
    // Predicated region
    $region18: #{cross_lm_prediction_head.1} parent=1 // pred_check
      _
    $region19: #{cross_lm_prediction_head.1} parent=1 // pred_check_branch
      %56 = sbr.rel (0) target = $region21
    $region20: #{cross_lm_prediction_head.1} parent=1 // pred_region
      %58 = vsyncadd [#allocation10], 0
      %s60 = sshll.u32 %s4, 4
      %s61 = int_to_ptr.hbm [resolvable:$true] %s60
      %s62 = sshll.u32 [#allocation9], 4
      %s63 = int_to_ptr.vmem [resolvable:$true] %s62
      %65 = dma.hbm_to_vmem [thread:$0]  %s61, 32, %s63, [#allocation10]
    $region21: #{cross_lm_prediction_head.1} parent=1 // pred_fallthru
      _
    // Predicated region
    $region22: #{cross_lm_prediction_head.1} parent=1 // pred_check
      _
    $region23: #{cross_lm_prediction_head.1} parent=1 // pred_check_branch
      %67 = sbr.rel (0) target = $region25
    $region24: #{cross_lm_prediction_head.1} parent=1 // pred_region
      %69 = vsyncadd [#allocation10], 0
      %s70 = sshll.u32 %s5, 4
      %s71 = int_to_ptr.hbm [resolvable:$true] %s70
      %s72 = sshll.u32 [#allocation11], 4
      %s73 = int_to_ptr.vmem [resolvable:$true] %s72
      %78 = dma.hbm_to_vmem [thread:$0]  %s71, 32768, %s73, [#allocation10], 256, 256, 16
    $region25: #{cross_lm_prediction_head.1} parent=1 // pred_fallthru
      _
    // Predicated region
    $region26: #{cross_lm_prediction_head.1} parent=1 // pred_check
      _
    $region27: #{cross_lm_prediction_head.1} parent=1 // pred_check_branch
      %80 = sbr.rel (0) target = $region29
    $region28: #{cross_lm_prediction_head.1} parent=1 // pred_region
      _
    $region29: #{cross_lm_prediction_head.1} parent=1 // pred_fallthru
      _
    // Predicated region
    $region30: #{cross_lm_prediction_head.1} parent=1 // pred_check
      _
    $region31: #{cross_lm_prediction_head.1} parent=1 // pred_check_branch
      %82 = sbr.rel (0) target = $region33
    $region32: #{cross_lm_prediction_head.1} parent=1 // pred_region
      %84 = dma.done [#allocation4], 512
    $region33: #{cross_lm_prediction_head.1} parent=1 // pred_fallthru
      _
    // Predicated region
    $region34: #{cross_lm_prediction_head.1} parent=1 // pred_check
      _
    $region35: #{cross_lm_prediction_head.1} parent=1 // pred_check_branch
      %86 = sbr.rel (0) target = $region37
    $region36: #{cross_lm_prediction_head.1} parent=1 // pred_region
      %88 = dma.done [#allocation7], 8192
    $region37: #{cross_lm_prediction_head.1} parent=1 // pred_fallthru
      _
    // Predicated region
    $region38: #{cross_lm_prediction_head.1} parent=1 // pred_check
      _
    $region39: #{cross_lm_prediction_head.1} parent=1 // pred_check_branch
      %90 = sbr.rel (0) target = $region41
    $region40: #{cross_lm_prediction_head.1} parent=1 // pred_region
      %92 = dma.done [#allocation7], 32
    $region41: #{cross_lm_prediction_head.1} parent=1 // pred_fallthru
      _
    // Predicated region
    $region42: #{cross_lm_prediction_head.1} parent=1 // pred_check
      _
    $region43: #{cross_lm_prediction_head.1} parent=1 // pred_check_branch
      %94 = sbr.rel (0) target = $region45
    $region44: #{cross_lm_prediction_head.1} parent=1 // pred_region
      %96 = dma.done [#allocation10], 32
    $region45: #{cross_lm_prediction_head.1} parent=1 // pred_fallthru
      _
    // Predicated region
    $region46: #{cross_lm_prediction_head.1} parent=1 // pred_check
      _
    $region47: #{cross_lm_prediction_head.1} parent=1 // pred_check_branch
      %98 = sbr.rel (0) target = $region49
    $region48: #{cross_lm_prediction_head.1} parent=1 // pred_region
      %100 = dma.done [#allocation10], 32768
    $region49: #{cross_lm_prediction_head.1} parent=1 // pred_fallthru
      _
    %p101 = scmp.eq.s32.totalorder 0, 0
    // Predicated region
    $region50: #{cross_lm_prediction_head.1} parent=1 // pred_check
      %p102 = pneg %p101
    $region51: #{cross_lm_prediction_head.1} parent=1 // pred_check_branch
      %104 = sbr.rel (%p102) target = $region53
    $region52: #{cross_lm_prediction_head.1} parent=1 // pred_region
      %v105 = vld [vmem:[#allocation3] sm:$0xff]
      %v106 = vld [vmem:[#allocation3 + $0x8] sm:$0xff]
      %v107 = vld [vmem:[#allocation3 + $0x10] sm:$0xff]
      %v108 = vld [vmem:[#allocation3 + $0x18] sm:$0xff]
      %v109 = vld [vmem:[#allocation6] sm:$0xff]
      %v110 = vld [vmem:[#allocation6 + $0x8] sm:$0xff]
      %v111 = vld [vmem:[#allocation6 + $0x10] sm:$0xff]
      %v112 = vld [vmem:[#allocation6 + $0x18] sm:$0xff]
      %v113 = vld [vmem:[#allocation6 + $0x20] sm:$0xff]
      %v114 = vld [vmem:[#allocation6 + $0x28] sm:$0xff]
      %v115 = vld [vmem:[#allocation6 + $0x30] sm:$0xff]
      %v116 = vld [vmem:[#allocation6 + $0x38] sm:$0xff]
      %v117 = vld [vmem:[#allocation6 + $0x40] sm:$0xff]
      %v118 = vld [vmem:[#allocation6 + $0x48] sm:$0xff]
      %v119 = vld [vmem:[#allocation6 + $0x50] sm:$0xff]
      %v120 = vld [vmem:[#allocation6 + $0x58] sm:$0xff]
      %v121 = vld [vmem:[#allocation6 + $0x60] sm:$0xff]
      %v122 = vld [vmem:[#allocation6 + $0x68] sm:$0xff]
      %v123 = vld [vmem:[#allocation6 + $0x70] sm:$0xff]
      %v124 = vld [vmem:[#allocation6 + $0x78] sm:$0xff]
      %v125 = vld [vmem:[#allocation6 + $0x80] sm:$0xff]
      %v126 = vld [vmem:[#allocation6 + $0x88] sm:$0xff]
      %v127 = vld [vmem:[#allocation6 + $0x90] sm:$0xff]
      %v128 = vld [vmem:[#allocation6 + $0x98] sm:$0xff]
      %v129 = vld [vmem:[#allocation6 + $0xa0] sm:$0xff]
      %v130 = vld [vmem:[#allocation6 + $0xa8] sm:$0xff]
      %v131 = vld [vmem:[#allocation6 + $0xb0] sm:$0xff]
      %v132 = vld [vmem:[#allocation6 + $0xb8] sm:$0xff]
      %v133 = vld [vmem:[#allocation6 + $0xc0] sm:$0xff]
      %v134 = vld [vmem:[#allocation6 + $0xc8] sm:$0xff]
      %v135 = vld [vmem:[#allocation6 + $0xd0] sm:$0xff]
      %v136 = vld [vmem:[#allocation6 + $0xd8] sm:$0xff]
      %v137 = vld [vmem:[#allocation6 + $0xe0] sm:$0xff]
      %v138 = vld [vmem:[#allocation6 + $0xe8] sm:$0xff]
      %v139 = vld [vmem:[#allocation6 + $0xf0] sm:$0xff]
      %v140 = vld [vmem:[#allocation6 + $0xf8] sm:$0xff]
      %v141 = vld [vmem:[#allocation6 + $0x100] sm:$0xff]
      %v142 = vld [vmem:[#allocation6 + $0x108] sm:$0xff]
      %v143 = vld [vmem:[#allocation6 + $0x110] sm:$0xff]
      %v144 = vld [vmem:[#allocation6 + $0x118] sm:$0xff]
      %v145 = vld [vmem:[#allocation6 + $0x120] sm:$0xff]
      %v146 = vld [vmem:[#allocation6 + $0x128] sm:$0xff]
      %v147 = vld [vmem:[#allocation6 + $0x130] sm:$0xff]
      %v148 = vld [vmem:[#allocation6 + $0x138] sm:$0xff]
      %v149 = vld [vmem:[#allocation6 + $0x140] sm:$0xff]
      %v150 = vld [vmem:[#allocation6 + $0x148] sm:$0xff]
      %v151 = vld [vmem:[#allocation6 + $0x150] sm:$0xff]
      %v152 = vld [vmem:[#allocation6 + $0x158] sm:$0xff]
      %v153 = vld [vmem:[#allocation6 + $0x160] sm:$0xff]
      %v154 = vld [vmem:[#allocation6 + $0x168] sm:$0xff]
      %v155 = vld [vmem:[#allocation6 + $0x170] sm:$0xff]
      %v156 = vld [vmem:[#allocation6 + $0x178] sm:$0xff]
      %v157 = vld [vmem:[#allocation6 + $0x180] sm:$0xff]
      %v158 = vld [vmem:[#allocation6 + $0x188] sm:$0xff]
      %v159 = vld [vmem:[#allocation6 + $0x190] sm:$0xff]
      %v160 = vld [vmem:[#allocation6 + $0x198] sm:$0xff]
      %v161 = vld [vmem:[#allocation6 + $0x1a0] sm:$0xff]
      %v162 = vld [vmem:[#allocation6 + $0x1a8] sm:$0xff]
      %v163 = vld [vmem:[#allocation6 + $0x1b0] sm:$0xff]
      %v164 = vld [vmem:[#allocation6 + $0x1b8] sm:$0xff]
      %v165 = vld [vmem:[#allocation6 + $0x1c0] sm:$0xff]
      %v166 = vld [vmem:[#allocation6 + $0x1c8] sm:$0xff]
      %v167 = vld [vmem:[#allocation6 + $0x1d0] sm:$0xff]
      %v168 = vld [vmem:[#allocation6 + $0x1d8] sm:$0xff]
      %v169 = vld [vmem:[#allocation6 + $0x1e0] sm:$0xff]
      %v170 = vld [vmem:[#allocation6 + $0x1e8] sm:$0xff]
      %v171 = vld [vmem:[#allocation6 + $0x1f0] sm:$0xff]
      %v172 = vld [vmem:[#allocation6 + $0x1f8] sm:$0xff]
      %v173 = vld [vmem:[%s2] sm:$0x3]
      %v175 = vperm.slane %v173, 0
      %v176 = vperm.slane %v173, 1
      %179 = vmatpush.xpose.msra.mxu0 %v139
      %180 = vmatpush.xpose.msra.mxu0 %v137
      %181 = vmatpush.xpose.msra.mxu0 %v135
      %182 = vmatpush.xpose.msra.mxu0 %v133
      %183 = vmatpush.xpose.msra.mxu0 %v131
      %184 = vmatpush.xpose.msra.mxu0 %v129
      %185 = vmatpush.xpose.msra.mxu0 %v127
      %186 = vmatpush.xpose.msra.mxu0 %v125
      %187 = vmatpush.xpose.msra.mxu0 %v123
      %188 = vmatpush.xpose.msra.mxu0 %v121
      %189 = vmatpush.xpose.msra.mxu0 %v119
      %190 = vmatpush.xpose.msra.mxu0 %v117
      %191 = vmatpush.xpose.msra.mxu0 %v115
      %192 = vmatpush.xpose.msra.mxu0 %v113
      %193 = vmatpush.xpose.msra.mxu0 %v111
      %194 = vmatpush.xpose.msra.mxu0 %v109
      %195 = vmatmul.f32.gmra.mxu0 %v105
      %v196 = vpop.f32.mrf.mxu0
      %v197 = vadd.f32 %v175, %v196
      %198 = vmatmul.f32.gmra.mxu0 %v107
      %v199 = vpop.f32.mrf.mxu0
      %v200 = vadd.f32 %v175, %v199
      %201 = vdwg.mxu0
      %202 = vmatpush.xpose.msra.mxu0 %v140
      %203 = vmatpush.xpose.msra.mxu0 %v138
      %204 = vmatpush.xpose.msra.mxu0 %v136
      %205 = vmatpush.xpose.msra.mxu0 %v134
      %206 = vmatpush.xpose.msra.mxu0 %v132
      %207 = vmatpush.xpose.msra.mxu0 %v130
      %208 = vmatpush.xpose.msra.mxu0 %v128
      %209 = vmatpush.xpose.msra.mxu0 %v126
      %210 = vmatpush.xpose.msra.mxu0 %v124
      %211 = vmatpush.xpose.msra.mxu0 %v122
      %212 = vmatpush.xpose.msra.mxu0 %v120
      %213 = vmatpush.xpose.msra.mxu0 %v118
      %214 = vmatpush.xpose.msra.mxu0 %v116
      %215 = vmatpush.xpose.msra.mxu0 %v114
      %216 = vmatpush.xpose.msra.mxu0 %v112
      %217 = vmatpush.xpose.msra.mxu0 %v110
      %218 = vmatmul.f32.gmra.mxu0 %v106
      %v219 = vpop.f32.mrf.mxu0
      %v220 = vadd.f32 %v197, %v219
      %221 = vmatmul.f32.gmra.mxu0 %v108
      %v222 = vpop.f32.mrf.mxu0
      %v223 = vadd.f32 %v200, %v222
      %224 = vdwg.mxu0
      %225 = vmatpush.xpose.msra.mxu0 %v171
      %226 = vmatpush.xpose.msra.mxu0 %v169
      %227 = vmatpush.xpose.msra.mxu0 %v167
      %228 = vmatpush.xpose.msra.mxu0 %v165
      %229 = vmatpush.xpose.msra.mxu0 %v163
      %230 = vmatpush.xpose.msra.mxu0 %v161
      %231 = vmatpush.xpose.msra.mxu0 %v159
      %232 = vmatpush.xpose.msra.mxu0 %v157
      %233 = vmatpush.xpose.msra.mxu0 %v155
      %234 = vmatpush.xpose.msra.mxu0 %v153
      %235 = vmatpush.xpose.msra.mxu0 %v151
      %236 = vmatpush.xpose.msra.mxu0 %v149
      %237 = vmatpush.xpose.msra.mxu0 %v147
      %238 = vmatpush.xpose.msra.mxu0 %v145
      %239 = vmatpush.xpose.msra.mxu0 %v143
      %240 = vmatpush.xpose.msra.mxu0 %v141
      %241 = vmatmul.f32.gmra.mxu0 %v105
      %v242 = vpop.f32.mrf.mxu0
      %v243 = vadd.f32 %v176, %v242
      %244 = vmatmul.f32.gmra.mxu0 %v107
      %v245 = vpop.f32.mrf.mxu0
      %v246 = vadd.f32 %v176, %v245
      %247 = vdwg.mxu0
      %248 = vmatpush.xpose.msra.mxu0 %v172
      %249 = vmatpush.xpose.msra.mxu0 %v170
      %250 = vmatpush.xpose.msra.mxu0 %v168
      %251 = vmatpush.xpose.msra.mxu0 %v166
      %252 = vmatpush.xpose.msra.mxu0 %v164
      %253 = vmatpush.xpose.msra.mxu0 %v162
      %254 = vmatpush.xpose.msra.mxu0 %v160
      %255 = vmatpush.xpose.msra.mxu0 %v158
      %256 = vmatpush.xpose.msra.mxu0 %v156
      %257 = vmatpush.xpose.msra.mxu0 %v154
      %258 = vmatpush.xpose.msra.mxu0 %v152
      %259 = vmatpush.xpose.msra.mxu0 %v150
      %260 = vmatpush.xpose.msra.mxu0 %v148
      %261 = vmatpush.xpose.msra.mxu0 %v146
      %262 = vmatpush.xpose.msra.mxu0 %v144
      %263 = vmatpush.xpose.msra.mxu0 %v142
      %264 = vmatmul.f32.gmra.mxu0 %v106
      %v265 = vpop.f32.mrf.mxu0
      %v266 = vadd.f32 %v243, %v265
      %267 = vmatmul.f32.gmra.mxu0 %v108
      %v268 = vpop.f32.mrf.mxu0
      %v269 = vadd.f32 %v246, %v268
      %270 = vdwg.mxu0
      %v271 = vmul.f32 %v220, 0.5
      %v272 = vmul.f32 %v266, 0.5
      %v273 = vmul.f32 %v223, 0.5
      %v274 = vmul.f32 %v269, 0.5
      %v275 = vmul.f32 %v220, 0.70710677
      %v276 = vmul.f32 %v266, 0.70710677
      %v277 = vmul.f32 %v223, 0.70710677
      %v278 = vmul.f32 %v269, 0.70710677
      %v279 = vand.u32 2147483647, %v275
      %v280 = vand.u32 2147483647, %v276
      %v281 = vand.u32 2147483647, %v277
      %v282 = vand.u32 2147483647, %v278
      %v283 = vmul.f32 %v279, 0.3275911
      %v284 = vmul.f32 %v280, 0.3275911
      %v285 = vmul.f32 %v281, 0.3275911
      %v286 = vmul.f32 %v282, 0.3275911
      %v287 = vadd.f32 %v283, 1.0
      %v288 = vadd.f32 %v284, 1.0
      %v289 = vadd.f32 %v285, 1.0
      %v290 = vadd.f32 %v286, 1.0
      %v291 = vrcp.pop %v287
      %v292 = vmul.f32 %v287, %v291
      %v293 = vsub.f32 1.0, %v292
      %v294 = vmul.f32 %v291, %v293
      %v295 = vadd.f32 %v291, %v294
      %vm296 = vweird.f32 %v287
      %vm297 = vweird.f32 %v291
      %vm298 = vmor %vm296, %vm297
      %v299 = vsel %vm298, %v291, %v295
      %v300 = vand.u32 2147483647, %v287
      %vm301 = vcmp.eq.f32.partialorder %v300, 8.507059e+37
      %v302 = vand.u32 %v287, 2147483648
      %v303 = vor.u32 1.1754944e-38, %v302
      %v304 = vsel %vm301, %v303, %v299
      %v305 = vmul.f32 1.0, %v304
      %v306 = vrcp.pop %v288
      %v307 = vmul.f32 %v288, %v306
      %v308 = vsub.f32 1.0, %v307
      %v309 = vmul.f32 %v306, %v308
      %v310 = vadd.f32 %v306, %v309
      %vm311 = vweird.f32 %v288
      %vm312 = vweird.f32 %v306
      %vm313 = vmor %vm311, %vm312
      %v314 = vsel %vm313, %v306, %v310
      %v315 = vand.u32 2147483647, %v288
      %vm316 = vcmp.eq.f32.partialorder %v315, 8.507059e+37
      %v317 = vand.u32 %v288, 2147483648
      %v318 = vor.u32 1.1754944e-38, %v317
      %v319 = vsel %vm316, %v318, %v314
      %v320 = vmul.f32 1.0, %v319
      %v321 = vrcp.pop %v289
      %v322 = vmul.f32 %v289, %v321
      %v323 = vsub.f32 1.0, %v322
      %v324 = vmul.f32 %v321, %v323
      %v325 = vadd.f32 %v321, %v324
      %vm326 = vweird.f32 %v289
      %vm327 = vweird.f32 %v321
      %vm328 = vmor %vm326, %vm327
      %v329 = vsel %vm328, %v321, %v325
      %v330 = vand.u32 2147483647, %v289
      %vm331 = vcmp.eq.f32.partialorder %v330, 8.507059e+37
      %v332 = vand.u32 %v289, 2147483648
      %v333 = vor.u32 1.1754944e-38, %v332
      %v334 = vsel %vm331, %v333, %v329
      %v335 = vmul.f32 1.0, %v334
      %v336 = vrcp.pop %v290
      %v337 = vmul.f32 %v290, %v336
      %v338 = vsub.f32 1.0, %v337
      %v339 = vmul.f32 %v336, %v338
      %v340 = vadd.f32 %v336, %v339
      %vm341 = vweird.f32 %v290
      %vm342 = vweird.f32 %v336
      %vm343 = vmor %vm341, %vm342
      %v344 = vsel %vm343, %v336, %v340
      %v345 = vand.u32 2147483647, %v290
      %vm346 = vcmp.eq.f32.partialorder %v345, 8.507059e+37
      %v347 = vand.u32 %v290, 2147483648
      %v348 = vor.u32 1.1754944e-38, %v347
      %v349 = vsel %vm346, %v348, %v344
      %v350 = vmul.f32 1.0, %v349
      %v351 = vmul.f32 %v305, 1.0614054
      %v352 = vmul.f32 %v320, 1.0614054
      %v353 = vmul.f32 %v335, 1.0614054
      %v354 = vmul.f32 %v350, 1.0614054
      %v355 = vadd.f32 %v351, -1.4531521
      %v356 = vadd.f32 %v352, -1.4531521
      %v357 = vadd.f32 %v353, -1.4531521
      %v358 = vadd.f32 %v354, -1.4531521
      %v359 = vmul.f32 %v355, %v305
      %v360 = vmul.f32 %v356, %v320
      %v361 = vmul.f32 %v357, %v335
      %v362 = vmul.f32 %v358, %v350
      %v363 = vadd.f32 %v359, 1.4214138
      %v364 = vadd.f32 %v360, 1.4214138
      %v365 = vadd.f32 %v361, 1.4214138
      %v366 = vadd.f32 %v362, 1.4214138
      %v367 = vmul.f32 %v363, %v305
      %v368 = vmul.f32 %v364, %v320
      %v369 = vmul.f32 %v365, %v335
      %v370 = vmul.f32 %v366, %v350
      %v371 = vadd.f32 %v367, -0.28449672
      %v372 = vadd.f32 %v368, -0.28449672
      %v373 = vadd.f32 %v369, -0.28449672
      %v374 = vadd.f32 %v370, -0.28449672
      %v375 = vmul.f32 %v371, %v305
      %v376 = vmul.f32 %v372, %v320
      %v377 = vmul.f32 %v373, %v335
      %v378 = vmul.f32 %v374, %v350
      %v379 = vadd.f32 %v375, 0.2548296
      %v380 = vadd.f32 %v376, 0.2548296
      %v381 = vadd.f32 %v377, 0.2548296
      %v382 = vadd.f32 %v378, 0.2548296
      %v383 = vmul.f32 %v379, %v305
      %v384 = vmul.f32 %v380, %v320
      %v385 = vmul.f32 %v381, %v335
      %v386 = vmul.f32 %v382, %v350
      %v387 = vsub.f32 0.0, %v279
      %v388 = vsub.f32 0.0, %v280
      %v389 = vsub.f32 0.0, %v281
      %v390 = vsub.f32 0.0, %v282
      %v391 = vmul.f32 %v387, %v279
      %v392 = vmul.f32 %v388, %v280
      %v393 = vmul.f32 %v389, %v281
      %v394 = vmul.f32 %v390, %v282
      %v395 = vmul.f32 %v391, 1.442695
      %v396 = vpow.pop %v395
      %v397 = vmul.f32 %v392, 1.442695
      %v398 = vpow.pop %v397
      %v399 = vmul.f32 %v393, 1.442695
      %v400 = vpow.pop %v399
      %v401 = vmul.f32 %v394, 1.442695
      %v402 = vpow.pop %v401
      %v403 = vmul.f32 %v383, %v396
      %v404 = vmul.f32 %v384, %v398
      %v405 = vmul.f32 %v385, %v400
      %v406 = vmul.f32 %v386, %v402
      %v407 = vsub.f32 1.0, %v403
      %v408 = vsub.f32 1.0, %v404
      %v409 = vsub.f32 1.0, %v405
      %v410 = vsub.f32 1.0, %v406
      %vm411 = vcmp.ge.f32.partialorder %v275, 0.0
      %vm412 = vcmp.ge.f32.partialorder %v276, 0.0
      %vm413 = vcmp.ge.f32.partialorder %v277, 0.0
      %vm414 = vcmp.ge.f32.partialorder %v278, 0.0
      %v415 = vsub.f32 0.0, %v407
      %v416 = vsub.f32 0.0, %v408
      %v417 = vsub.f32 0.0, %v409
      %v418 = vsub.f32 0.0, %v410
      %v419 = vsel %vm411, %v407, %v415
      %v420 = vsel %vm412, %v408, %v416
      %v421 = vsel %vm413, %v409, %v417
      %v422 = vsel %vm414, %v410, %v418
      %v423 = vadd.f32 %v419, 1.0
      %v424 = vadd.f32 %v420, 1.0
      %v425 = vadd.f32 %v421, 1.0
      %v426 = vadd.f32 %v422, 1.0
      %v427 = vmul.f32 %v271, %v423
      %v428 = vmul.f32 %v272, %v424
      %v429 = vmul.f32 %v273, %v425
      %v430 = vmul.f32 %v274, %v426
      %v431 = vadd.f32 %v427, %v428
      %432 = vadd.xlane.f32.xlu0 %v431
      %v433 = vpop.xlane.xlu0 %432
      %v434 = vadd.f32 %v429, %v430
      %435 = vadd.xlane.f32.xlu0 %v434
      %v436 = vpop.xlane.xlu0 %435
      %v437 = vrcp.pop 256.0
      %v438 = vmul.f32 256.0, %v437
      %v439 = vsub.f32 1.0, %v438
      %v440 = vmul.f32 %v437, %v439
      %v441 = vadd.f32 %v437, %v440
      %vm442 = vweird.f32 %v437
      %v443 = vsel %vm442, %v437, %v441
      %v444 = vmul.f32 %v433, %v443
      %v445 = vmul.f32 %v436, %v443
      %v446 = vsub.f32 %v427, %v444
      %v447 = vsub.f32 %v428, %v444
      %v448 = vsub.f32 %v429, %v445
      %v449 = vsub.f32 %v430, %v445
      %v450 = vmul.f32 %v446, %v446
      %v451 = vmul.f32 %v447, %v447
      %v452 = vmul.f32 %v448, %v448
      %v453 = vmul.f32 %v449, %v449
      %v454 = vadd.f32 %v450, %v451
      %455 = vadd.xlane.f32.xlu0 %v454
      %v456 = vpop.xlane.xlu0 %455
      %v457 = vadd.f32 %v452, %v453
      %458 = vadd.xlane.f32.xlu0 %v457
      %v459 = vpop.xlane.xlu0 %458
      %v460 = vmul.f32 %v456, %v443
      %v461 = vmul.f32 %v459, %v443
      %v462 = vadd.f32 %v460, 1e-12
      %v463 = vadd.f32 %v461, 1e-12
      %v464 = vrsqrt.pop %v462
      %v465 = vmul.f32 %v464, %v462
      %v466 = vmul.f32 %v465, %v464
      %v467 = vmul.f32 0.5, %v466
      %v468 = vsub.f32 1.5, %v467
      %v469 = vmul.f32 %v464, %v468
      %vm470 = vweird.f32 %v462
      %vm471 = vweird.f32 %v464
      %vm472 = vmor %vm470, %vm471
      %v473 = vsel %vm472, %v464, %v469
      %v474 = vrsqrt.pop %v463
      %v475 = vmul.f32 %v474, %v463
      %v476 = vmul.f32 %v475, %v474
      %v477 = vmul.f32 0.5, %v476
      %v478 = vsub.f32 1.5, %v477
      %v479 = vmul.f32 %v474, %v478
      %vm480 = vweird.f32 %v463
      %vm481 = vweird.f32 %v474
      %vm482 = vmor %vm480, %vm481
      %v483 = vsel %vm482, %v474, %v479
      %v484 = vmul.f32 %v446, %v473
      %v485 = vmul.f32 %v447, %v473
      %v486 = vmul.f32 %v448, %v483
      %v487 = vmul.f32 %v449, %v483
      %v488 = vld [vmem:[#allocation8] sm:$0x3]
      %v490 = vperm.slane %v488, 0
      %v491 = vperm.slane %v488, 1
      %v494 = vmul.f32 %v484, %v490
      %v495 = vmul.f32 %v485, %v491
      %v496 = vmul.f32 %v486, %v490
      %v497 = vmul.f32 %v487, %v491
      %v498 = vld [vmem:[#allocation9] sm:$0x3]
      %v500 = vperm.slane %v498, 0
      %v501 = vperm.slane %v498, 1
      %v504 = vadd.f32 %v494, %v500
      %v505 = vadd.f32 %v495, %v501
      %v506 = vadd.f32 %v496, %v500
      %v507 = vadd.f32 %v497, %v501
      %508 = vst [vmem:[#allocation2] sm:$0xff] %v504
      %509 = vst [vmem:[#allocation2 + $0x8] sm:$0xff] %v505
      %510 = vst [vmem:[#allocation2 + $0x10] sm:$0xff] %v506
      %511 = vst [vmem:[#allocation2 + $0x18] sm:$0xff] %v507
    $region53: #{cross_lm_prediction_head.1} parent=1 // pred_fallthru
      _
    %v512 = vld [vmem:[#allocation11] sm:$0xff]
    %v513 = vld [vmem:[#allocation11 + $0x8] sm:$0xff]
    %v514 = vld [vmem:[#allocation11 + $0x10] sm:$0xff]
    %v515 = vld [vmem:[#allocation11 + $0x18] sm:$0xff]
    %v516 = vld [vmem:[#allocation11 + $0x20] sm:$0xff]
    %v517 = vld [vmem:[#allocation11 + $0x28] sm:$0xff]
    %v518 = vld [vmem:[#allocation11 + $0x30] sm:$0xff]
    %v519 = vld [vmem:[#allocation11 + $0x38] sm:$0xff]
    %v520 = vld [vmem:[#allocation11 + $0x40] sm:$0xff]
    %v521 = vld [vmem:[#allocation11 + $0x48] sm:$0xff]
    %v522 = vld [vmem:[#allocation11 + $0x50] sm:$0xff]
    %v523 = vld [vmem:[#allocation11 + $0x58] sm:$0xff]
    %v524 = vld [vmem:[#allocation11 + $0x60] sm:$0xff]
    %v525 = vld [vmem:[#allocation11 + $0x68] sm:$0xff]
    %v526 = vld [vmem:[#allocation11 + $0x70] sm:$0xff]
    %v527 = vld [vmem:[#allocation11 + $0x78] sm:$0xff]
    %v528 = vld [vmem:[#allocation11 + $0x80] sm:$0xff]
    %v529 = vld [vmem:[#allocation11 + $0x88] sm:$0xff]
    %v530 = vld [vmem:[#allocation11 + $0x90] sm:$0xff]
    %v531 = vld [vmem:[#allocation11 + $0x98] sm:$0xff]
    %v532 = vld [vmem:[#allocation11 + $0xa0] sm:$0xff]
    %v533 = vld [vmem:[#allocation11 + $0xa8] sm:$0xff]
    %v534 = vld [vmem:[#allocation11 + $0xb0] sm:$0xff]
    %v535 = vld [vmem:[#allocation11 + $0xb8] sm:$0xff]
    %v536 = vld [vmem:[#allocation11 + $0xc0] sm:$0xff]
    %v537 = vld [vmem:[#allocation11 + $0xc8] sm:$0xff]
    %v538 = vld [vmem:[#allocation11 + $0xd0] sm:$0xff]
    %v539 = vld [vmem:[#allocation11 + $0xd8] sm:$0xff]
    %v540 = vld [vmem:[#allocation11 + $0xe0] sm:$0xff]
    %v541 = vld [vmem:[#allocation11 + $0xe8] sm:$0xff]
    %v542 = vld [vmem:[#allocation11 + $0xf0] sm:$0xff]
    %v543 = vld [vmem:[#allocation11 + $0xf8] sm:$0xff]
    %v544 = vld [vmem:[#allocation11 + $0x100] sm:$0xff]
    %v545 = vld [vmem:[#allocation11 + $0x108] sm:$0xff]
    %v546 = vld [vmem:[#allocation11 + $0x110] sm:$0xff]
    %v547 = vld [vmem:[#allocation11 + $0x118] sm:$0xff]
    %v548 = vld [vmem:[#allocation11 + $0x120] sm:$0xff]
    %v549 = vld [vmem:[#allocation11 + $0x128] sm:$0xff]
    %v550 = vld [vmem:[#allocation11 + $0x130] sm:$0xff]
    %v551 = vld [vmem:[#allocation11 + $0x138] sm:$0xff]
    %v552 = vld [vmem:[#allocation11 + $0x140] sm:$0xff]
    %v553 = vld [vmem:[#allocation11 + $0x148] sm:$0xff]
    %v554 = vld [vmem:[#allocation11 + $0x150] sm:$0xff]
    %v555 = vld [vmem:[#allocation11 + $0x158] sm:$0xff]
    %v556 = vld [vmem:[#allocation11 + $0x160] sm:$0xff]
    %v557 = vld [vmem:[#allocation11 + $0x168] sm:$0xff]
    %v558 = vld [vmem:[#allocation11 + $0x170] sm:$0xff]
    %v559 = vld [vmem:[#allocation11 + $0x178] sm:$0xff]
    %v560 = vld [vmem:[#allocation11 + $0x180] sm:$0xff]
    %v561 = vld [vmem:[#allocation11 + $0x188] sm:$0xff]
    %v562 = vld [vmem:[#allocation11 + $0x190] sm:$0xff]
    %v563 = vld [vmem:[#allocation11 + $0x198] sm:$0xff]
    %v564 = vld [vmem:[#allocation11 + $0x1a0] sm:$0xff]
    %v565 = vld [vmem:[#allocation11 + $0x1a8] sm:$0xff]
    %v566 = vld [vmem:[#allocation11 + $0x1b0] sm:$0xff]
    %v567 = vld [vmem:[#allocation11 + $0x1b8] sm:$0xff]
    %v568 = vld [vmem:[#allocation11 + $0x1c0] sm:$0xff]
    %v569 = vld [vmem:[#allocation11 + $0x1c8] sm:$0xff]
    %v570 = vld [vmem:[#allocation11 + $0x1d0] sm:$0xff]
    %v571 = vld [vmem:[#allocation11 + $0x1d8] sm:$0xff]
    %v572 = vld [vmem:[#allocation11 + $0x1e0] sm:$0xff]
    %v573 = vld [vmem:[#allocation11 + $0x1e8] sm:$0xff]
    %v574 = vld [vmem:[#allocation11 + $0x1f0] sm:$0xff]
    %v575 = vld [vmem:[#allocation11 + $0x1f8] sm:$0xff]
    %v576 = vld [vmem:[#allocation11 + $0x200] sm:$0xff]
    %v577 = vld [vmem:[#allocation11 + $0x208] sm:$0xff]
    %v578 = vld [vmem:[#allocation11 + $0x210] sm:$0xff]
    %v579 = vld [vmem:[#allocation11 + $0x218] sm:$0xff]
    %v580 = vld [vmem:[#allocation11 + $0x220] sm:$0xff]
    %v581 = vld [vmem:[#allocation11 + $0x228] sm:$0xff]
    %v582 = vld [vmem:[#allocation11 + $0x230] sm:$0xff]
    %v583 = vld [vmem:[#allocation11 + $0x238] sm:$0xff]
    %v584 = vld [vmem:[#allocation11 + $0x240] sm:$0xff]
    %v585 = vld [vmem:[#allocation11 + $0x248] sm:$0xff]
    %v586 = vld [vmem:[#allocation11 + $0x250] sm:$0xff]
    %v587 = vld [vmem:[#allocation11 + $0x258] sm:$0xff]
    %v588 = vld [vmem:[#allocation11 + $0x260] sm:$0xff]
    %v589 = vld [vmem:[#allocation11 + $0x268] sm:$0xff]
    %v590 = vld [vmem:[#allocation11 + $0x270] sm:$0xff]
    %v591 = vld [vmem:[#allocation11 + $0x278] sm:$0xff]
    %v592 = vld [vmem:[#allocation11 + $0x280] sm:$0xff]
    %v593 = vld [vmem:[#allocation11 + $0x288] sm:$0xff]
    %v594 = vld [vmem:[#allocation11 + $0x290] sm:$0xff]
    %v595 = vld [vmem:[#allocation11 + $0x298] sm:$0xff]
    %v596 = vld [vmem:[#allocation11 + $0x2a0] sm:$0xff]
    %v597 = vld [vmem:[#allocation11 + $0x2a8] sm:$0xff]
    %v598 = vld [vmem:[#allocation11 + $0x2b0] sm:$0xff]
    %v599 = vld [vmem:[#allocation11 + $0x2b8] sm:$0xff]
    %v600 = vld [vmem:[#allocation11 + $0x2c0] sm:$0xff]
    %v601 = vld [vmem:[#allocation11 + $0x2c8] sm:$0xff]
    %v602 = vld [vmem:[#allocation11 + $0x2d0] sm:$0xff]
    %v603 = vld [vmem:[#allocation11 + $0x2d8] sm:$0xff]
    %v604 = vld [vmem:[#allocation11 + $0x2e0] sm:$0xff]
    %v605 = vld [vmem:[#allocation11 + $0x2e8] sm:$0xff]
    %v606 = vld [vmem:[#allocation11 + $0x2f0] sm:$0xff]
    %v607 = vld [vmem:[#allocation11 + $0x2f8] sm:$0xff]
    %v608 = vld [vmem:[#allocation11 + $0x300] sm:$0xff]
    %v609 = vld [vmem:[#allocation11 + $0x308] sm:$0xff]
    %v610 = vld [vmem:[#allocation11 + $0x310] sm:$0xff]
    %v611 = vld [vmem:[#allocation11 + $0x318] sm:$0xff]
    %v612 = vld [vmem:[#allocation11 + $0x320] sm:$0xff]
    %v613 = vld [vmem:[#allocation11 + $0x328] sm:$0xff]
    %v614 = vld [vmem:[#allocation11 + $0x330] sm:$0xff]
    %v615 = vld [vmem:[#allocation11 + $0x338] sm:$0xff]
    %v616 = vld [vmem:[#allocation11 + $0x340] sm:$0xff]
    %v617 = vld [vmem:[#allocation11 + $0x348] sm:$0xff]
    %v618 = vld [vmem:[#allocation11 + $0x350] sm:$0xff]
    %v619 = vld [vmem:[#allocation11 + $0x358] sm:$0xff]
    %v620 = vld [vmem:[#allocation11 + $0x360] sm:$0xff]
    %v621 = vld [vmem:[#allocation11 + $0x368] sm:$0xff]
    %v622 = vld [vmem:[#allocation11 + $0x370] sm:$0xff]
    %v623 = vld [vmem:[#allocation11 + $0x378] sm:$0xff]
    %v624 = vld [vmem:[#allocation11 + $0x380] sm:$0xff]
    %v625 = vld [vmem:[#allocation11 + $0x388] sm:$0xff]
    %v626 = vld [vmem:[#allocation11 + $0x390] sm:$0xff]
    %v627 = vld [vmem:[#allocation11 + $0x398] sm:$0xff]
    %v628 = vld [vmem:[#allocation11 + $0x3a0] sm:$0xff]
    %v629 = vld [vmem:[#allocation11 + $0x3a8] sm:$0xff]
    %v630 = vld [vmem:[#allocation11 + $0x3b0] sm:$0xff]
    %v631 = vld [vmem:[#allocation11 + $0x3b8] sm:$0xff]
    %v632 = vld [vmem:[#allocation11 + $0x3c0] sm:$0xff]
    %v633 = vld [vmem:[#allocation11 + $0x3c8] sm:$0xff]
    %v634 = vld [vmem:[#allocation11 + $0x3d0] sm:$0xff]
    %v635 = vld [vmem:[#allocation11 + $0x3d8] sm:$0xff]
    %v636 = vld [vmem:[#allocation11 + $0x3e0] sm:$0xff]
    %v637 = vld [vmem:[#allocation11 + $0x3e8] sm:$0xff]
    %v638 = vld [vmem:[#allocation11 + $0x3f0] sm:$0xff]
    %v639 = vld [vmem:[#allocation11 + $0x3f8] sm:$0xff]
    %v640 = vld [vmem:[#allocation11 + $0x400] sm:$0xff]
    %v641 = vld [vmem:[#allocation11 + $0x408] sm:$0xff]
    %v642 = vld [vmem:[#allocation11 + $0x410] sm:$0xff]
    %v643 = vld [vmem:[#allocation11 + $0x418] sm:$0xff]
    %v644 = vld [vmem:[#allocation11 + $0x420] sm:$0xff]
    %v645 = vld [vmem:[#allocation11 + $0x428] sm:$0xff]
    %v646 = vld [vmem:[#allocation11 + $0x430] sm:$0xff]
    %v647 = vld [vmem:[#allocation11 + $0x438] sm:$0xff]
    %v648 = vld [vmem:[#allocation11 + $0x440] sm:$0xff]
    %v649 = vld [vmem:[#allocation11 + $0x448] sm:$0xff]
    %v650 = vld [vmem:[#allocation11 + $0x450] sm:$0xff]
    %v651 = vld [vmem:[#allocation11 + $0x458] sm:$0xff]
    %v652 = vld [vmem:[#allocation11 + $0x460] sm:$0xff]
    %v653 = vld [vmem:[#allocation11 + $0x468] sm:$0xff]
    %v654 = vld [vmem:[#allocation11 + $0x470] sm:$0xff]
    %v655 = vld [vmem:[#allocation11 + $0x478] sm:$0xff]
    %v656 = vld [vmem:[#allocation11 + $0x480] sm:$0xff]
    %v657 = vld [vmem:[#allocation11 + $0x488] sm:$0xff]
    %v658 = vld [vmem:[#allocation11 + $0x490] sm:$0xff]
    %v659 = vld [vmem:[#allocation11 + $0x498] sm:$0xff]
    %v660 = vld [vmem:[#allocation11 + $0x4a0] sm:$0xff]
    %v661 = vld [vmem:[#allocation11 + $0x4a8] sm:$0xff]
    %v662 = vld [vmem:[#allocation11 + $0x4b0] sm:$0xff]
    %v663 = vld [vmem:[#allocation11 + $0x4b8] sm:$0xff]
    %v664 = vld [vmem:[#allocation11 + $0x4c0] sm:$0xff]
    %v665 = vld [vmem:[#allocation11 + $0x4c8] sm:$0xff]
    %v666 = vld [vmem:[#allocation11 + $0x4d0] sm:$0xff]
    %v667 = vld [vmem:[#allocation11 + $0x4d8] sm:$0xff]
    %v668 = vld [vmem:[#allocation11 + $0x4e0] sm:$0xff]
    %v669 = vld [vmem:[#allocation11 + $0x4e8] sm:$0xff]
    %v670 = vld [vmem:[#allocation11 + $0x4f0] sm:$0xff]
    %v671 = vld [vmem:[#allocation11 + $0x4f8] sm:$0xff]
    %v672 = vld [vmem:[#allocation11 + $0x500] sm:$0xff]
    %v673 = vld [vmem:[#allocation11 + $0x508] sm:$0xff]
    %v674 = vld [vmem:[#allocation11 + $0x510] sm:$0xff]
    %v675 = vld [vmem:[#allocation11 + $0x518] sm:$0xff]
    %v676 = vld [vmem:[#allocation11 + $0x520] sm:$0xff]
    %v677 = vld [vmem:[#allocation11 + $0x528] sm:$0xff]
    %v678 = vld [vmem:[#allocation11 + $0x530] sm:$0xff]
    %v679 = vld [vmem:[#allocation11 + $0x538] sm:$0xff]
    %v680 = vld [vmem:[#allocation11 + $0x540] sm:$0xff]
    %v681 = vld [vmem:[#allocation11 + $0x548] sm:$0xff]
    %v682 = vld [vmem:[#allocation11 + $0x550] sm:$0xff]
    %v683 = vld [vmem:[#allocation11 + $0x558] sm:$0xff]
    %v684 = vld [vmem:[#allocation11 + $0x560] sm:$0xff]
    %v685 = vld [vmem:[#allocation11 + $0x568] sm:$0xff]
    %v686 = vld [vmem:[#allocation11 + $0x570] sm:$0xff]
    %v687 = vld [vmem:[#allocation11 + $0x578] sm:$0xff]
    %v688 = vld [vmem:[#allocation11 + $0x580] sm:$0xff]
    %v689 = vld [vmem:[#allocation11 + $0x588] sm:$0xff]
    %v690 = vld [vmem:[#allocation11 + $0x590] sm:$0xff]
    %v691 = vld [vmem:[#allocation11 + $0x598] sm:$0xff]
    %v692 = vld [vmem:[#allocation11 + $0x5a0] sm:$0xff]
    %v693 = vld [vmem:[#allocation11 + $0x5a8] sm:$0xff]
    %v694 = vld [vmem:[#allocation11 + $0x5b0] sm:$0xff]
    %v695 = vld [vmem:[#allocation11 + $0x5b8] sm:$0xff]
    %v696 = vld [vmem:[#allocation11 + $0x5c0] sm:$0xff]
    %v697 = vld [vmem:[#allocation11 + $0x5c8] sm:$0xff]
    %v698 = vld [vmem:[#allocation11 + $0x5d0] sm:$0xff]
    %v699 = vld [vmem:[#allocation11 + $0x5d8] sm:$0xff]
    %v700 = vld [vmem:[#allocation11 + $0x5e0] sm:$0xff]
    %v701 = vld [vmem:[#allocation11 + $0x5e8] sm:$0xff]
    %v702 = vld [vmem:[#allocation11 + $0x5f0] sm:$0xff]
    %v703 = vld [vmem:[#allocation11 + $0x5f8] sm:$0xff]
    %v704 = vld [vmem:[#allocation11 + $0x600] sm:$0xff]
    %v705 = vld [vmem:[#allocation11 + $0x608] sm:$0xff]
    %v706 = vld [vmem:[#allocation11 + $0x610] sm:$0xff]
    %v707 = vld [vmem:[#allocation11 + $0x618] sm:$0xff]
    %v708 = vld [vmem:[#allocation11 + $0x620] sm:$0xff]
    %v709 = vld [vmem:[#allocation11 + $0x628] sm:$0xff]
    %v710 = vld [vmem:[#allocation11 + $0x630] sm:$0xff]
    %v711 = vld [vmem:[#allocation11 + $0x638] sm:$0xff]
    %v712 = vld [vmem:[#allocation11 + $0x640] sm:$0xff]
    %v713 = vld [vmem:[#allocation11 + $0x648] sm:$0xff]
    %v714 = vld [vmem:[#allocation11 + $0x650] sm:$0xff]
    %v715 = vld [vmem:[#allocation11 + $0x658] sm:$0xff]
    %v716 = vld [vmem:[#allocation11 + $0x660] sm:$0xff]
    %v717 = vld [vmem:[#allocation11 + $0x668] sm:$0xff]
    %v718 = vld [vmem:[#allocation11 + $0x670] sm:$0xff]
    %v719 = vld [vmem:[#allocation11 + $0x678] sm:$0xff]
    %v720 = vld [vmem:[#allocation11 + $0x680] sm:$0xff]
    %v721 = vld [vmem:[#allocation11 + $0x688] sm:$0xff]
    %v722 = vld [vmem:[#allocation11 + $0x690] sm:$0xff]
    %v723 = vld [vmem:[#allocation11 + $0x698] sm:$0xff]
    %v724 = vld [vmem:[#allocation11 + $0x6a0] sm:$0xff]
    %v725 = vld [vmem:[#allocation11 + $0x6a8] sm:$0xff]
    %v726 = vld [vmem:[#allocation11 + $0x6b0] sm:$0xff]
    %v727 = vld [vmem:[#allocation11 + $0x6b8] sm:$0xff]
    %v728 = vld [vmem:[#allocation11 + $0x6c0] sm:$0xff]
    %v729 = vld [vmem:[#allocation11 + $0x6c8] sm:$0xff]
    %v730 = vld [vmem:[#allocation11 + $0x6d0] sm:$0xff]
    %v731 = vld [vmem:[#allocation11 + $0x6d8] sm:$0xff]
    %v732 = vld [vmem:[#allocation11 + $0x6e0] sm:$0xff]
    %v733 = vld [vmem:[#allocation11 + $0x6e8] sm:$0xff]
    %v734 = vld [vmem:[#allocation11 + $0x6f0] sm:$0xff]
    %v735 = vld [vmem:[#allocation11 + $0x6f8] sm:$0xff]
    %v736 = vld [vmem:[#allocation11 + $0x700] sm:$0xff]
    %v737 = vld [vmem:[#allocation11 + $0x708] sm:$0xff]
    %v738 = vld [vmem:[#allocation11 + $0x710] sm:$0xff]
    %v739 = vld [vmem:[#allocation11 + $0x718] sm:$0xff]
    %v740 = vld [vmem:[#allocation11 + $0x720] sm:$0xff]
    %v741 = vld [vmem:[#allocation11 + $0x728] sm:$0xff]
    %v742 = vld [vmem:[#allocation11 + $0x730] sm:$0xff]
    %v743 = vld [vmem:[#allocation11 + $0x738] sm:$0xff]
    %v744 = vld [vmem:[#allocation11 + $0x740] sm:$0xff]
    %v745 = vld [vmem:[#allocation11 + $0x748] sm:$0xff]
    %v746 = vld [vmem:[#allocation11 + $0x750] sm:$0xff]
    %v747 = vld [vmem:[#allocation11 + $0x758] sm:$0xff]
    %v748 = vld [vmem:[#allocation11 + $0x760] sm:$0xff]
    %v749 = vld [vmem:[#allocation11 + $0x768] sm:$0xff]
    %v750 = vld [vmem:[#allocation11 + $0x770] sm:$0xff]
    %v751 = vld [vmem:[#allocation11 + $0x778] sm:$0xff]
    %v752 = vld [vmem:[#allocation11 + $0x780] sm:$0xff]
    %v753 = vld [vmem:[#allocation11 + $0x788] sm:$0xff]
    %v754 = vld [vmem:[#allocation11 + $0x790] sm:$0xff]
    %v755 = vld [vmem:[#allocation11 + $0x798] sm:$0xff]
    %v756 = vld [vmem:[#allocation11 + $0x7a0] sm:$0xff]
    %v757 = vld [vmem:[#allocation11 + $0x7a8] sm:$0xff]
    %v758 = vld [vmem:[#allocation11 + $0x7b0] sm:$0xff]
    %v759 = vld [vmem:[#allocation11 + $0x7b8] sm:$0xff]
    %v760 = vld [vmem:[#allocation11 + $0x7c0] sm:$0xff]
    %v761 = vld [vmem:[#allocation11 + $0x7c8] sm:$0xff]
    %v762 = vld [vmem:[#allocation11 + $0x7d0] sm:$0xff]
    %v763 = vld [vmem:[#allocation11 + $0x7d8] sm:$0xff]
    %v764 = vld [vmem:[#allocation11 + $0x7e0] sm:$0xff]
    %v765 = vld [vmem:[#allocation11 + $0x7e8] sm:$0xff]
    %v766 = vld [vmem:[#allocation11 + $0x7f0] sm:$0xff]
    %v767 = vld [vmem:[#allocation11 + $0x7f8] sm:$0xff]
    %v768 = vld [vmem:[#allocation2] sm:$0xff]
    %v769 = vld [vmem:[#allocation2 + $0x8] sm:$0xff]
    %v770 = vld [vmem:[#allocation2 + $0x10] sm:$0xff]
    %v771 = vld [vmem:[#allocation2 + $0x18] sm:$0xff]
    %v772 = vld [vmem:[%s6] sm:$0xff]
    %v774 = vperm.slane %v772, 0
    %v775 = vperm.slane %v772, 1
    %v776 = vperm.slane %v772, 2
    %v777 = vperm.slane %v772, 3
    %v778 = vperm.slane %v772, 4
    %v779 = vperm.slane %v772, 5
    %v780 = vperm.slane %v772, 6
    %v781 = vperm.slane %v772, 7
    %790 = vmatpush.xpose.msra.mxu0 %v542
    %791 = vmatpush.xpose.msra.mxu0 %v540
    %792 = vmatpush.xpose.msra.mxu0 %v538
    %793 = vmatpush.xpose.msra.mxu0 %v536
    %794 = vmatpush.xpose.msra.mxu0 %v534
    %795 = vmatpush.xpose.msra.mxu0 %v532
    %796 = vmatpush.xpose.msra.mxu0 %v530
    %797 = vmatpush.xpose.msra.mxu0 %v528
    %798 = vmatpush.xpose.msra.mxu0 %v526
    %799 = vmatpush.xpose.msra.mxu0 %v524
    %800 = vmatpush.xpose.msra.mxu0 %v522
    %801 = vmatpush.xpose.msra.mxu0 %v520
    %802 = vmatpush.xpose.msra.mxu0 %v518
    %803 = vmatpush.xpose.msra.mxu0 %v516
    %804 = vmatpush.xpose.msra.mxu0 %v514
    %805 = vmatpush.xpose.msra.mxu0 %v512
    %806 = vmatmul.f32.gmra.mxu0 %v768
    %v807 = vpop.f32.mrf.mxu0
    %v808 = vadd.f32 %v774, %v807
    %809 = vmatmul.f32.gmra.mxu0 %v770
    %v810 = vpop.f32.mrf.mxu0
    %v811 = vadd.f32 %v774, %v810
    %812 = vdwg.mxu0
    %813 = vmatpush.xpose.msra.mxu0 %v543
    %814 = vmatpush.xpose.msra.mxu0 %v541
    %815 = vmatpush.xpose.msra.mxu0 %v539
    %816 = vmatpush.xpose.msra.mxu0 %v537
    %817 = vmatpush.xpose.msra.mxu0 %v535
    %818 = vmatpush.xpose.msra.mxu0 %v533
    %819 = vmatpush.xpose.msra.mxu0 %v531
    %820 = vmatpush.xpose.msra.mxu0 %v529
    %821 = vmatpush.xpose.msra.mxu0 %v527
    %822 = vmatpush.xpose.msra.mxu0 %v525
    %823 = vmatpush.xpose.msra.mxu0 %v523
    %824 = vmatpush.xpose.msra.mxu0 %v521
    %825 = vmatpush.xpose.msra.mxu0 %v519
    %826 = vmatpush.xpose.msra.mxu0 %v517
    %827 = vmatpush.xpose.msra.mxu0 %v515
    %828 = vmatpush.xpose.msra.mxu0 %v513
    %829 = vmatmul.f32.gmra.mxu0 %v769
    %v830 = vpop.f32.mrf.mxu0
    %v831 = vadd.f32 %v808, %v830
    %832 = vmatmul.f32.gmra.mxu0 %v771
    %v833 = vpop.f32.mrf.mxu0
    %v834 = vadd.f32 %v811, %v833
    %835 = vdwg.mxu0
    %836 = vmatpush.xpose.msra.mxu0 %v574
    %837 = vmatpush.xpose.msra.mxu0 %v572
    %838 = vmatpush.xpose.msra.mxu0 %v570
    %839 = vmatpush.xpose.msra.mxu0 %v568
    %840 = vmatpush.xpose.msra.mxu0 %v566
    %841 = vmatpush.xpose.msra.mxu0 %v564
    %842 = vmatpush.xpose.msra.mxu0 %v562
    %843 = vmatpush.xpose.msra.mxu0 %v560
    %844 = vmatpush.xpose.msra.mxu0 %v558
    %845 = vmatpush.xpose.msra.mxu0 %v556
    %846 = vmatpush.xpose.msra.mxu0 %v554
    %847 = vmatpush.xpose.msra.mxu0 %v552
    %848 = vmatpush.xpose.msra.mxu0 %v550
    %849 = vmatpush.xpose.msra.mxu0 %v548
    %850 = vmatpush.xpose.msra.mxu0 %v546
    %851 = vmatpush.xpose.msra.mxu0 %v544
    %852 = vmatmul.f32.gmra.mxu0 %v768
    %v853 = vpop.f32.mrf.mxu0
    %v854 = vadd.f32 %v775, %v853
    %855 = vmatmul.f32.gmra.mxu0 %v770
    %v856 = vpop.f32.mrf.mxu0
    %v857 = vadd.f32 %v775, %v856
    %858 = vdwg.mxu0
    %859 = vmatpush.xpose.msra.mxu0 %v575
    %860 = vmatpush.xpose.msra.mxu0 %v573
    %861 = vmatpush.xpose.msra.mxu0 %v571
    %862 = vmatpush.xpose.msra.mxu0 %v569
    %863 = vmatpush.xpose.msra.mxu0 %v567
    %864 = vmatpush.xpose.msra.mxu0 %v565
    %865 = vmatpush.xpose.msra.mxu0 %v563
    %866 = vmatpush.xpose.msra.mxu0 %v561
    %867 = vmatpush.xpose.msra.mxu0 %v559
    %868 = vmatpush.xpose.msra.mxu0 %v557
    %869 = vmatpush.xpose.msra.mxu0 %v555
    %870 = vmatpush.xpose.msra.mxu0 %v553
    %871 = vmatpush.xpose.msra.mxu0 %v551
    %872 = vmatpush.xpose.msra.mxu0 %v549
    %873 = vmatpush.xpose.msra.mxu0 %v547
    %874 = vmatpush.xpose.msra.mxu0 %v545
    %875 = vmatmul.f32.gmra.mxu0 %v769
    %v876 = vpop.f32.mrf.mxu0
    %v877 = vadd.f32 %v854, %v876
    %878 = vmatmul.f32.gmra.mxu0 %v771
    %v879 = vpop.f32.mrf.mxu0
    %v880 = vadd.f32 %v857, %v879
    %881 = vdwg.mxu0
    %882 = vmatpush.xpose.msra.mxu0 %v606
    %883 = vmatpush.xpose.msra.mxu0 %v604
    %884 = vmatpush.xpose.msra.mxu0 %v602
    %885 = vmatpush.xpose.msra.mxu0 %v600
    %886 = vmatpush.xpose.msra.mxu0 %v598
    %887 = vmatpush.xpose.msra.mxu0 %v596
    %888 = vmatpush.xpose.msra.mxu0 %v594
    %889 = vmatpush.xpose.msra.mxu0 %v592
    %890 = vmatpush.xpose.msra.mxu0 %v590
    %891 = vmatpush.xpose.msra.mxu0 %v588
    %892 = vmatpush.xpose.msra.mxu0 %v586
    %893 = vmatpush.xpose.msra.mxu0 %v584
    %894 = vmatpush.xpose.msra.mxu0 %v582
    %895 = vmatpush.xpose.msra.mxu0 %v580
    %896 = vmatpush.xpose.msra.mxu0 %v578
    %897 = vmatpush.xpose.msra.mxu0 %v576
    %898 = vmatmul.f32.gmra.mxu0 %v768
    %v899 = vpop.f32.mrf.mxu0
    %v900 = vadd.f32 %v776, %v899
    %901 = vmatmul.f32.gmra.mxu0 %v770
    %v902 = vpop.f32.mrf.mxu0
    %v903 = vadd.f32 %v776, %v902
    %904 = vdwg.mxu0
    %905 = vmatpush.xpose.msra.mxu0 %v607
    %906 = vmatpush.xpose.msra.mxu0 %v605
    %907 = vmatpush.xpose.msra.mxu0 %v603
    %908 = vmatpush.xpose.msra.mxu0 %v601
    %909 = vmatpush.xpose.msra.mxu0 %v599
    %910 = vmatpush.xpose.msra.mxu0 %v597
    %911 = vmatpush.xpose.msra.mxu0 %v595
    %912 = vmatpush.xpose.msra.mxu0 %v593
    %913 = vmatpush.xpose.msra.mxu0 %v591
    %914 = vmatpush.xpose.msra.mxu0 %v589
    %915 = vmatpush.xpose.msra.mxu0 %v587
    %916 = vmatpush.xpose.msra.mxu0 %v585
    %917 = vmatpush.xpose.msra.mxu0 %v583
    %918 = vmatpush.xpose.msra.mxu0 %v581
    %919 = vmatpush.xpose.msra.mxu0 %v579
    %920 = vmatpush.xpose.msra.mxu0 %v577
    %921 = vmatmul.f32.gmra.mxu0 %v769
    %v922 = vpop.f32.mrf.mxu0
    %v923 = vadd.f32 %v900, %v922
    %924 = vmatmul.f32.gmra.mxu0 %v771
    %v925 = vpop.f32.mrf.mxu0
    %v926 = vadd.f32 %v903, %v925
    %927 = vdwg.mxu0
    %928 = vmatpush.xpose.msra.mxu0 %v638
    %929 = vmatpush.xpose.msra.mxu0 %v636
    %930 = vmatpush.xpose.msra.mxu0 %v634
    %931 = vmatpush.xpose.msra.mxu0 %v632
    %932 = vmatpush.xpose.msra.mxu0 %v630
    %933 = vmatpush.xpose.msra.mxu0 %v628
    %934 = vmatpush.xpose.msra.mxu0 %v626
    %935 = vmatpush.xpose.msra.mxu0 %v624
    %936 = vmatpush.xpose.msra.mxu0 %v622
    %937 = vmatpush.xpose.msra.mxu0 %v620
    %938 = vmatpush.xpose.msra.mxu0 %v618
    %939 = vmatpush.xpose.msra.mxu0 %v616
    %940 = vmatpush.xpose.msra.mxu0 %v614
    %941 = vmatpush.xpose.msra.mxu0 %v612
    %942 = vmatpush.xpose.msra.mxu0 %v610
    %943 = vmatpush.xpose.msra.mxu0 %v608
    %944 = vmatmul.f32.gmra.mxu0 %v768
    %v945 = vpop.f32.mrf.mxu0
    %v946 = vadd.f32 %v777, %v945
    %947 = vmatmul.f32.gmra.mxu0 %v770
    %v948 = vpop.f32.mrf.mxu0
    %v949 = vadd.f32 %v777, %v948
    %950 = vdwg.mxu0
    %951 = vmatpush.xpose.msra.mxu0 %v639
    %952 = vmatpush.xpose.msra.mxu0 %v637
    %953 = vmatpush.xpose.msra.mxu0 %v635
    %954 = vmatpush.xpose.msra.mxu0 %v633
    %955 = vmatpush.xpose.msra.mxu0 %v631
    %956 = vmatpush.xpose.msra.mxu0 %v629
    %957 = vmatpush.xpose.msra.mxu0 %v627
    %958 = vmatpush.xpose.msra.mxu0 %v625
    %959 = vmatpush.xpose.msra.mxu0 %v623
    %960 = vmatpush.xpose.msra.mxu0 %v621
    %961 = vmatpush.xpose.msra.mxu0 %v619
    %962 = vmatpush.xpose.msra.mxu0 %v617
    %963 = vmatpush.xpose.msra.mxu0 %v615
    %964 = vmatpush.xpose.msra.mxu0 %v613
    %965 = vmatpush.xpose.msra.mxu0 %v611
    %966 = vmatpush.xpose.msra.mxu0 %v609
    %967 = vmatmul.f32.gmra.mxu0 %v769
    %v968 = vpop.f32.mrf.mxu0
    %v969 = vadd.f32 %v946, %v968
    %970 = vmatmul.f32.gmra.mxu0 %v771
    %v971 = vpop.f32.mrf.mxu0
    %v972 = vadd.f32 %v949, %v971
    %973 = vdwg.mxu0
    %974 = vmatpush.xpose.msra.mxu0 %v670
    %975 = vmatpush.xpose.msra.mxu0 %v668
    %976 = vmatpush.xpose.msra.mxu0 %v666
    %977 = vmatpush.xpose.msra.mxu0 %v664
    %978 = vmatpush.xpose.msra.mxu0 %v662
    %979 = vmatpush.xpose.msra.mxu0 %v660
    %980 = vmatpush.xpose.msra.mxu0 %v658
    %981 = vmatpush.xpose.msra.mxu0 %v656
    %982 = vmatpush.xpose.msra.mxu0 %v654
    %983 = vmatpush.xpose.msra.mxu0 %v652
    %984 = vmatpush.xpose.msra.mxu0 %v650
    %985 = vmatpush.xpose.msra.mxu0 %v648
    %986 = vmatpush.xpose.msra.mxu0 %v646
    %987 = vmatpush.xpose.msra.mxu0 %v644
    %988 = vmatpush.xpose.msra.mxu0 %v642
    %989 = vmatpush.xpose.msra.mxu0 %v640
    %990 = vmatmul.f32.gmra.mxu0 %v768
    %v991 = vpop.f32.mrf.mxu0
    %v992 = vadd.f32 %v778, %v991
    %993 = vmatmul.f32.gmra.mxu0 %v770
    %v994 = vpop.f32.mrf.mxu0
    %v995 = vadd.f32 %v778, %v994
    %996 = vdwg.mxu0
    %997 = vmatpush.xpose.msra.mxu0 %v671
    %998 = vmatpush.xpose.msra.mxu0 %v669
    %999 = vmatpush.xpose.msra.mxu0 %v667
    %1000 = vmatpush.xpose.msra.mxu0 %v665
    %1001 = vmatpush.xpose.msra.mxu0 %v663
    %1002 = vmatpush.xpose.msra.mxu0 %v661
    %1003 = vmatpush.xpose.msra.mxu0 %v659
    %1004 = vmatpush.xpose.msra.mxu0 %v657
    %1005 = vmatpush.xpose.msra.mxu0 %v655
    %1006 = vmatpush.xpose.msra.mxu0 %v653
    %1007 = vmatpush.xpose.msra.mxu0 %v651
    %1008 = vmatpush.xpose.msra.mxu0 %v649
    %1009 = vmatpush.xpose.msra.mxu0 %v647
    %1010 = vmatpush.xpose.msra.mxu0 %v645
    %1011 = vmatpush.xpose.msra.mxu0 %v643
    %1012 = vmatpush.xpose.msra.mxu0 %v641
    %1013 = vmatmul.f32.gmra.mxu0 %v769
    %v1014 = vpop.f32.mrf.mxu0
    %v1015 = vadd.f32 %v992, %v1014
    %1016 = vmatmul.f32.gmra.mxu0 %v771
    %v1017 = vpop.f32.mrf.mxu0
    %v1018 = vadd.f32 %v995, %v1017
    %1019 = vdwg.mxu0
    %1020 = vmatpush.xpose.msra.mxu0 %v702
    %1021 = vmatpush.xpose.msra.mxu0 %v700
    %1022 = vmatpush.xpose.msra.mxu0 %v698
    %1023 = vmatpush.xpose.msra.mxu0 %v696
    %1024 = vmatpush.xpose.msra.mxu0 %v694
    %1025 = vmatpush.xpose.msra.mxu0 %v692
    %1026 = vmatpush.xpose.msra.mxu0 %v690
    %1027 = vmatpush.xpose.msra.mxu0 %v688
    %1028 = vmatpush.xpose.msra.mxu0 %v686
    %1029 = vmatpush.xpose.msra.mxu0 %v684
    %1030 = vmatpush.xpose.msra.mxu0 %v682
    %1031 = vmatpush.xpose.msra.mxu0 %v680
    %1032 = vmatpush.xpose.msra.mxu0 %v678
    %1033 = vmatpush.xpose.msra.mxu0 %v676
    %1034 = vmatpush.xpose.msra.mxu0 %v674
    %1035 = vmatpush.xpose.msra.mxu0 %v672
    %1036 = vmatmul.f32.gmra.mxu0 %v768
    %v1037 = vpop.f32.mrf.mxu0
    %v1038 = vadd.f32 %v779, %v1037
    %1039 = vmatmul.f32.gmra.mxu0 %v770
    %v1040 = vpop.f32.mrf.mxu0
    %v1041 = vadd.f32 %v779, %v1040
    %1042 = vdwg.mxu0
    %1043 = vmatpush.xpose.msra.mxu0 %v703
    %1044 = vmatpush.xpose.msra.mxu0 %v701
    %1045 = vmatpush.xpose.msra.mxu0 %v699
    %1046 = vmatpush.xpose.msra.mxu0 %v697
    %1047 = vmatpush.xpose.msra.mxu0 %v695
    %1048 = vmatpush.xpose.msra.mxu0 %v693
    %1049 = vmatpush.xpose.msra.mxu0 %v691
    %1050 = vmatpush.xpose.msra.mxu0 %v689
    %1051 = vmatpush.xpose.msra.mxu0 %v687
    %1052 = vmatpush.xpose.msra.mxu0 %v685
    %1053 = vmatpush.xpose.msra.mxu0 %v683
    %1054 = vmatpush.xpose.msra.mxu0 %v681
    %1055 = vmatpush.xpose.msra.mxu0 %v679
    %1056 = vmatpush.xpose.msra.mxu0 %v677
    %1057 = vmatpush.xpose.msra.mxu0 %v675
    %1058 = vmatpush.xpose.msra.mxu0 %v673
    %1059 = vmatmul.f32.gmra.mxu0 %v769
    %v1060 = vpop.f32.mrf.mxu0
    %v1061 = vadd.f32 %v1038, %v1060
    %1062 = vmatmul.f32.gmra.mxu0 %v771
    %v1063 = vpop.f32.mrf.mxu0
    %v1064 = vadd.f32 %v1041, %v1063
    %1065 = vdwg.mxu0
    %1066 = vmatpush.xpose.msra.mxu0 %v734
    %1067 = vmatpush.xpose.msra.mxu0 %v732
    %1068 = vmatpush.xpose.msra.mxu0 %v730
    %1069 = vmatpush.xpose.msra.mxu0 %v728
    %1070 = vmatpush.xpose.msra.mxu0 %v726
    %1071 = vmatpush.xpose.msra.mxu0 %v724
    %1072 = vmatpush.xpose.msra.mxu0 %v722
    %1073 = vmatpush.xpose.msra.mxu0 %v720
    %1074 = vmatpush.xpose.msra.mxu0 %v718
    %1075 = vmatpush.xpose.msra.mxu0 %v716
    %1076 = vmatpush.xpose.msra.mxu0 %v714
    %1077 = vmatpush.xpose.msra.mxu0 %v712
    %1078 = vmatpush.xpose.msra.mxu0 %v710
    %1079 = vmatpush.xpose.msra.mxu0 %v708
    %1080 = vmatpush.xpose.msra.mxu0 %v706
    %1081 = vmatpush.xpose.msra.mxu0 %v704
    %1082 = vmatmul.f32.gmra.mxu0 %v768
    %v1083 = vpop.f32.mrf.mxu0
    %v1084 = vadd.f32 %v780, %v1083
    %1085 = vmatmul.f32.gmra.mxu0 %v770
    %v1086 = vpop.f32.mrf.mxu0
    %v1087 = vadd.f32 %v780, %v1086
    %1088 = vdwg.mxu0
    %1089 = vmatpush.xpose.msra.mxu0 %v735
    %1090 = vmatpush.xpose.msra.mxu0 %v733
    %1091 = vmatpush.xpose.msra.mxu0 %v731
    %1092 = vmatpush.xpose.msra.mxu0 %v729
    %1093 = vmatpush.xpose.msra.mxu0 %v727
    %1094 = vmatpush.xpose.msra.mxu0 %v725
    %1095 = vmatpush.xpose.msra.mxu0 %v723
    %1096 = vmatpush.xpose.msra.mxu0 %v721
    %1097 = vmatpush.xpose.msra.mxu0 %v719
    %1098 = vmatpush.xpose.msra.mxu0 %v717
    %1099 = vmatpush.xpose.msra.mxu0 %v715
    %1100 = vmatpush.xpose.msra.mxu0 %v713
    %1101 = vmatpush.xpose.msra.mxu0 %v711
    %1102 = vmatpush.xpose.msra.mxu0 %v709
    %1103 = vmatpush.xpose.msra.mxu0 %v707
    %1104 = vmatpush.xpose.msra.mxu0 %v705
    %1105 = vmatmul.f32.gmra.mxu0 %v769
    %v1106 = vpop.f32.mrf.mxu0
    %v1107 = vadd.f32 %v1084, %v1106
    %1108 = vmatmul.f32.gmra.mxu0 %v771
    %v1109 = vpop.f32.mrf.mxu0
    %v1110 = vadd.f32 %v1087, %v1109
    %1111 = vdwg.mxu0
    %1112 = vmatpush.xpose.msra.mxu0 %v766
    %1113 = vmatpush.xpose.msra.mxu0 %v764
    %1114 = vmatpush.xpose.msra.mxu0 %v762
    %1115 = vmatpush.xpose.msra.mxu0 %v760
    %1116 = vmatpush.xpose.msra.mxu0 %v758
    %1117 = vmatpush.xpose.msra.mxu0 %v756
    %1118 = vmatpush.xpose.msra.mxu0 %v754
    %1119 = vmatpush.xpose.msra.mxu0 %v752
    %1120 = vmatpush.xpose.msra.mxu0 %v750
    %1121 = vmatpush.xpose.msra.mxu0 %v748
    %1122 = vmatpush.xpose.msra.mxu0 %v746
    %1123 = vmatpush.xpose.msra.mxu0 %v744
    %1124 = vmatpush.xpose.msra.mxu0 %v742
    %1125 = vmatpush.xpose.msra.mxu0 %v740
    %1126 = vmatpush.xpose.msra.mxu0 %v738
    %1127 = vmatpush.xpose.msra.mxu0 %v736
    %1128 = vmatmul.f32.gmra.mxu0 %v768
    %v1129 = vpop.f32.mrf.mxu0
    %v1130 = vadd.f32 %v781, %v1129
    %1131 = vmatmul.f32.gmra.mxu0 %v770
    %v1132 = vpop.f32.mrf.mxu0
    %v1133 = vadd.f32 %v781, %v1132
    %1134 = vdwg.mxu0
    %1135 = vmatpush.xpose.msra.mxu0 %v767
    %1136 = vmatpush.xpose.msra.mxu0 %v765
    %1137 = vmatpush.xpose.msra.mxu0 %v763
    %1138 = vmatpush.xpose.msra.mxu0 %v761
    %1139 = vmatpush.xpose.msra.mxu0 %v759
    %1140 = vmatpush.xpose.msra.mxu0 %v757
    %1141 = vmatpush.xpose.msra.mxu0 %v755
    %1142 = vmatpush.xpose.msra.mxu0 %v753
    %1143 = vmatpush.xpose.msra.mxu0 %v751
    %1144 = vmatpush.xpose.msra.mxu0 %v749
    %1145 = vmatpush.xpose.msra.mxu0 %v747
    %1146 = vmatpush.xpose.msra.mxu0 %v745
    %1147 = vmatpush.xpose.msra.mxu0 %v743
    %1148 = vmatpush.xpose.msra.mxu0 %v741
    %1149 = vmatpush.xpose.msra.mxu0 %v739
    %1150 = vmatpush.xpose.msra.mxu0 %v737
    %1151 = vmatmul.f32.gmra.mxu0 %v769
    %v1152 = vpop.f32.mrf.mxu0
    %v1153 = vadd.f32 %v1130, %v1152
    %1154 = vmatmul.f32.gmra.mxu0 %v771
    %v1155 = vpop.f32.mrf.mxu0
    %v1156 = vadd.f32 %v1133, %v1155
    %1157 = vdwg.mxu0
    %1158 = vst [vmem:[#allocation12] sm:$0xff] %v831
    %1159 = vst [vmem:[#allocation12 + $0x8] sm:$0xff] %v877
    %1160 = vst [vmem:[#allocation12 + $0x10] sm:$0xff] %v923
    %1161 = vst [vmem:[#allocation12 + $0x18] sm:$0xff] %v969
    %1162 = vst [vmem:[#allocation12 + $0x20] sm:$0xff] %v1015
    %1163 = vst [vmem:[#allocation12 + $0x28] sm:$0xff] %v1061
    %1164 = vst [vmem:[#allocation12 + $0x30] sm:$0xff] %v1107
    %1165 = vst [vmem:[#allocation12 + $0x38] sm:$0xff] %v1153
    %1166 = vst [vmem:[#allocation12 + $0x40] sm:$0xff] %v834
    %1167 = vst [vmem:[#allocation12 + $0x48] sm:$0xff] %v880
    %1168 = vst [vmem:[#allocation12 + $0x50] sm:$0xff] %v926
    %1169 = vst [vmem:[#allocation12 + $0x58] sm:$0xff] %v972
    %1170 = vst [vmem:[#allocation12 + $0x60] sm:$0xff] %v1018
    %1171 = vst [vmem:[#allocation12 + $0x68] sm:$0xff] %v1064
    %1172 = vst [vmem:[#allocation12 + $0x70] sm:$0xff] %v1110
    %1173 = vst [vmem:[#allocation12 + $0x78] sm:$0xff] %v1156
    // Predicated region
    $region54: #{cross_lm_prediction_head.1} parent=1 // pred_check
      _
    $region55: #{cross_lm_prediction_head.1} parent=1 // pred_check_branch
      %1175 = sbr.rel (0) target = $region57
    $region56: #{cross_lm_prediction_head.1} parent=1 // pred_region
      %1177 = vsyncadd [#allocation5], 0
      %s1178 = sshll.u32 [#allocation12], 4
      %s1179 = int_to_ptr.vmem [resolvable:$true] %s1178
      %s1180 = sshll.u32 %s7, 4
      %s1181 = int_to_ptr.hbm [resolvable:$true] %s1180
      %1186 = dma.vmem_to_hbm [thread:$0]  %s1179, 2048, %s1181, [#allocation5], 1024, 1024, 64
    $region57: #{cross_lm_prediction_head.1} parent=1 // pred_fallthru
      _
    // Predicated region
    $region58: #{cross_lm_prediction_head.1} parent=1 // pred_check
      _
    $region59: #{cross_lm_prediction_head.1} parent=1 // pred_check_branch
      %1188 = sbr.rel (0) target = $region61
    $region60: #{cross_lm_prediction_head.1} parent=1 // pred_region
      %1190 = dma.done [#allocation5], 2048
    $region61: #{cross_lm_prediction_head.1} parent=1 // pred_fallthru
      _
    %1191 = vsyncpa [#allocation4], 1
    %1192 = vsyncpa [#allocation7], 1
    %1193 = vsyncpa [#allocation10], 1
    %1194 = vsyncpa [#allocation5], 1

</llo_original>
